<compile_context>
chip_gen: v7x
topology: tpu7x:2x2x1
jax: 0.10.0
libtpu: 0.0.40
codegen_flags: <defaults>
</compile_context>

<pallas_src>
import math
import functools

import jax
import jax.numpy as jnp
from jax.experimental import pallas as pl
from jax.experimental.pallas import tpu as pltpu


def _round_up(n, m):
    return ((n + m - 1) // m) * m


def _detect_vmem_capacity():
    try:
        info = pltpu.get_tpu_info()
        cap = getattr(info, "vmem_capacity_bytes", None)
        if cap:
            return int(cap)
    except Exception:
        pass
    return 128 * 1024 * 1024          # assume a 128 MiB-class chip if query fails


_VMEM_CAP = _detect_vmem_capacity()
if _VMEM_CAP <= 64 * 1024 * 1024:      # v7x-class: 64 MiB physical per TC
    _VMEM_LIMIT = 48 * 1024 * 1024
    _TILE_R = 1024
    _TILE_V = 1024
else:                                  # v5e/v6e-class: 128 MiB physical
    _VMEM_LIMIT = 96 * 1024 * 1024
    _TILE_R = 2048
    _TILE_V = 2048


# ----------------------------- in-kernel helpers -----------------------------

def _layernorm(x, scale, shift, eps=1e-5):
    # x: (L, D) f32; scale/shift: (1, D) f32.  Statistics kept in f32.
    mean = jnp.mean(x, axis=-1, keepdims=True)
    var = jnp.mean((x - mean) ** 2, axis=-1, keepdims=True)   # unbiased=False
    return scale * ((x - mean) * jax.lax.rsqrt(var + eps)) + shift


# ----------------------------- Pallas kernels --------------------------------

def attn_block_kernel(x_ref, wqkv_ref, wo_ref, bo_ref, s1_ref, h1_ref,
                      o_ref, *, num_heads):
    """norm1 -> fused QKV -> head-batched causal MHA -> out-proj -> residual."""
    x = x_ref[0]                                    # (L, D) f32
    L, D = x.shape
    H = num_heads
    hd = D // H

    xn = _layernorm(x, s1_ref[...], h1_ref[...]).astype(wqkv_ref.dtype)   # bf16
    qkv = jnp.dot(xn, wqkv_ref[...], preferred_element_type=jnp.float32)  # (L, 3D) f32

    # Fold 1/sqrt(hd) into q once (O(L*D) instead of O(L*L) scaling).
    q = qkv[:, :D] * (1.0 / math.sqrt(hd))
    k = qkv[:, D:2 * D]
    v = qkv[:, 2 * D:]

    # Head-batched formulation: single batched einsums, one lane-dense (L, D) ctx slab.
    qh = jnp.transpose(q.reshape(L, H, hd), (1, 0, 2)).astype(jnp.bfloat16)  # (H, L, hd)
    kh = jnp.transpose(k.reshape(L, H, hd), (1, 0, 2)).astype(jnp.bfloat16)
    vh = jnp.transpose(v.reshape(L, H, hd), (1, 0, 2)).astype(jnp.bfloat16)

    s = jnp.einsum('hqd,hkd->hqk', qh, kh,
                   preferred_element_type=jnp.float32)          # (H, L, L) f32
    row = jax.lax.broadcasted_iota(jnp.int32, (L, L), 0)
    col = jax.lax.broadcasted_iota(jnp.int32, (L, L), 1)
    s = jnp.where((col > row)[None, :, :], -1e30, s)            # finite mask value
    s = s - jnp.max(s, axis=-1, keepdims=True)
    p = jnp.exp(s)
    p = p / jnp.sum(p, axis=-1, keepdims=True)                  # exact reciprocal

    ctx = jnp.einsum('hqk,hkd->hqd', p.astype(jnp.bfloat16), vh,
                     preferred_element_type=jnp.float32)        # (H, L, hd) f32
    ctx = jnp.transpose(ctx, (1, 0, 2)).reshape(L, D).astype(jnp.bfloat16)

    attn = jnp.dot(ctx, wo_ref[...],
                   preferred_element_type=jnp.float32) + bo_ref[...]
    o_ref[0] = (x + attn).astype(o_ref.dtype)        # dropout = identity


def rff_ffn_kernel(x_ref, w_rff_ref, b_rff_ref, w_ff_ref, b_ff_ref,
                   s2_ref, h2_ref, o_ref, xn_ref, acc_ref, *, feat_scale):
    """norm2 -> RFF features -> linear_out -> residual, tiled over rff_dim (grid axis 1)."""
    r = pl.program_id(1)

    @pl.when(r == 0)
    def _():                                         # init: cache LN(x), zero accumulator
        xn_ref[...] = _layernorm(x_ref[0], s2_ref[...],
                                 h2_ref[...]).astype(xn_ref.dtype)
        acc_ref[...] = jnp.zeros_like(acc_ref)

    proj = jnp.dot(xn_ref[...], w_rff_ref[...],
                   preferred_element_type=jnp.float32) + b_rff_ref[...]
    feat = (feat_scale * jnp.cos(proj)).astype(w_ff_ref.dtype)
    acc_ref[...] += jnp.dot(feat, w_ff_ref[...], preferred_element_type=jnp.float32)

    @pl.when(r == pl.num_programs(1) - 1)
    def _():                                         # finalize: residual + bias
        o_ref[0] = (x_ref[0] + acc_ref[...] + b_ff_ref[...]).astype(o_ref.dtype)


def final_head_kernel(x_ref, s_ref, h_ref, w_ref, o_ref, xn_ref):
    """final LayerNorm (cached once per batch row) + vocab-tiled projection (no bias)."""
    @pl.when(pl.program_id(1) == 0)
    def _():
        xn_ref[...] = _layernorm(x_ref[0], s_ref[...], h_ref[...]).astype(xn_ref.dtype)

    o_ref[0] = jnp.dot(xn_ref[...], w_ref[...],
                       preferred_element_type=jnp.float32).astype(o_ref.dtype)


# ----------------------------- wrappers ---------------------------------------

def attn_block(x, p, *, num_heads):
    B, L, D = x.shape
    kern = functools.partial(attn_block_kernel, num_heads=num_heads)
    return pl.pallas_call(
        kern,
        out_shape=jax.ShapeDtypeStruct((B, L, D), x.dtype),
        grid=(B,),
        in_specs=[
            pl.BlockSpec((1, L, D), lambda b: (b, 0, 0)),
            pl.BlockSpec((D, 3 * D), lambda b: (0, 0)),
            pl.BlockSpec((D, D), lambda b: (0, 0)),
            pl.BlockSpec((1, D), lambda b: (0, 0)),
            pl.BlockSpec((1, D), lambda b: (0, 0)),
            pl.BlockSpec((1, D), lambda b: (0, 0)),
        ],
        out_specs=pl.BlockSpec((1, L, D), lambda b: (b, 0, 0)),
        compiler_params=pltpu.CompilerParams(
            dimension_semantics=("parallel",),
            vmem_limit_bytes=_VMEM_LIMIT),
    )(x, p['wqkv'], p['wo'], p['bo'], p['s1'], p['h1'])


def rff_ffn_block(x, p, *, rff_dim):
    B, L, D = x.shape
    R_pad = p['w_rff'].shape[1]                      # already padded in prepare_params
    tr = min(_TILE_R, R_pad)
    assert R_pad % tr == 0
    kern = functools.partial(rff_ffn_kernel, feat_scale=math.sqrt(2.0 / rff_dim))
    return pl.pallas_call(
        kern,
        out_shape=jax.ShapeDtypeStruct((B, L, D), x.dtype),
        grid=(B, R_pad // tr),
        in_specs=[
            pl.BlockSpec((1, L, D), lambda b, r: (b, 0, 0)),
            pl.BlockSpec((D, tr), lambda b, r: (0, r)),
            pl.BlockSpec((1, tr), lambda b, r: (0, r)),
            pl.BlockSpec((tr, D), lambda b, r: (r, 0)),
            pl.BlockSpec((1, D), lambda b, r: (0, 0)),
            pl.BlockSpec((1, D), lambda b, r: (0, 0)),
            pl.BlockSpec((1, D), lambda b, r: (0, 0)),
        ],
        out_specs=pl.BlockSpec((1, L, D), lambda b, r: (b, 0, 0)),
        scratch_shapes=[pltpu.VMEM((L, D), jnp.bfloat16),       # cached LN(x)
                        pltpu.VMEM((L, D), jnp.float32)],       # f32 accumulator
        compiler_params=pltpu.CompilerParams(
            dimension_semantics=("parallel", "arbitrary"),
            vmem_limit_bytes=_VMEM_LIMIT),
    )(x, p['w_rff'], p['b_rff'], p['w_ff'], p['b_ff'], p['s2'], p['h2'])


def final_head(x, scale, shift, w_head, *, vocab_size):
    B, L, D = x.shape
    V_pad = w_head.shape[1]                          # already padded in prepare_params
    tv = min(_TILE_V, V_pad)
    assert V_pad % tv == 0
    out = pl.pallas_call(
        final_head_kernel,
        out_shape=jax.ShapeDtypeStruct((B, L, V_pad), x.dtype),
        grid=(B, V_pad // tv),
        in_specs=[
            pl.BlockSpec((1, L, D), lambda b, v: (b, 0, 0)),
            pl.BlockSpec((1, D), lambda b, v: (0, 0)),
            pl.BlockSpec((1, D), lambda b, v: (0, 0)),
            pl.BlockSpec((D, tv), lambda b, v: (0, v)),
        ],
        out_specs=pl.BlockSpec((1, L, tv), lambda b, v: (b, 0, v)),
        scratch_shapes=[pltpu.VMEM((L, D), jnp.bfloat16)],      # cached final LN(x)
        compiler_params=pltpu.CompilerParams(
            dimension_semantics=("parallel", "arbitrary"),
            vmem_limit_bytes=_VMEM_LIMIT),
    )(x, scale, shift, w_head)
    return out[..., :vocab_size] if V_pad != vocab_size else out


def gpt_forward(dev_params, in_idx, cfg):
    B, L = in_idx.shape
    # Embedding gathers are glue (plain JAX); heavy math lives in the Pallas kernels.
    x = dev_params['tok_emb'][in_idx] + dev_params['pos_emb'][:L]        # (B, L, D) f32
    # drop_emb = identity
    for blk in dev_params['blocks']:
        x = attn_block(x, blk, num_heads=cfg['n_heads'])
        x = rff_ffn_block(x, blk, rff_dim=cfg['rff_dim'])
    return final_head(x, dev_params['f_scale'], dev_params['f_shift'],
                      dev_params['out_head'], vocab_size=cfg['vocab_size'])


# ----------------------------- parameter init / prep --------------------------

def init_params(key, cfg):
    D, V, C = cfg['emb_dim'], cfg['vocab_size'], cfg['context_length']
    R = cfg['rff_dim']
    keys = iter(jax.random.split(key, 4 + 8 * cfg['n_layers']))

    def nrm(shape, s=0.02):
        return (s * jax.random.normal(next(keys), shape)).astype(jnp.float32)

    params = {
        'tok_emb': nrm((V, D)),
        'pos_emb': nrm((C, D)),
        'f_scale': jnp.ones((1, D), jnp.float32),
        'f_shift': jnp.zeros((1, D), jnp.float32),
        'out_head': nrm((D, V)),
        'blocks': [],
    }
    for _ in range(cfg['n_layers']):
        blk = {
            'wq': nrm((D, D)), 'wk': nrm((D, D)), 'wv': nrm((D, D)),
            'wo': nrm((D, D)), 'bo': jnp.zeros((1, D), jnp.float32),
            # RFF params (fixed / non-trainable in torch, same semantics here)
            'w_rff': (jax.random.normal(next(keys), (D, R)) /
                      cfg['sigma']).astype(jnp.float32),
            'b_rff': (2.0 * math.pi *
                      jax.random.uniform(next(keys), (1, R))).astype(jnp.float32),
            'w_ff': nrm((R, D)), 'b_ff': jnp.zeros((1, D), jnp.float32),
            's1': jnp.ones((1, D), jnp.float32), 'h1': jnp.zeros((1, D), jnp.float32),
            's2': jnp.ones((1, D), jnp.float32), 'h2': jnp.zeros((1, D), jnp.float32),
        }
        params['blocks'].append(blk)
    return params


def prepare_params(params, cfg):
    """One-time device prep: fuse QKV, pad rff/vocab dims to tile multiples, cast to bf16."""
    bf16 = jnp.bfloat16
    V, R = cfg['vocab_size'], cfg['rff_dim']

    tv = min(_TILE_V, _round_up(V, 128))
    V_pad = _round_up(V, tv)
    out_head = params['out_head']
    if V_pad != V:                                    # pad once, not per-forward
        out_head = jnp.pad(out_head, ((0, 0), (0, V_pad - V)))

    tr = min(_TILE_R, _round_up(R, 128))
    R_pad = _round_up(R, tr)

    dev = {
        'tok_emb': params['tok_emb'],
        'pos_emb': params['pos_emb'],
        'f_scale': params['f_scale'],
        'f_shift': params['f_shift'],
        'out_head': out_head.astype(bf16),
        'blocks': [],
    }
    for blk in params['blocks']:
        w_rff, b_rff, w_ff = blk['w_rff'], blk['b_rff'], blk['w_ff']
        if R_pad != R:
            # padded rff features multiply zero rows of w_ff -> contribute exactly 0
            w_rff = jnp.pad(w_rff, ((0, 0), (0, R_pad - R)))
            b_rff = jnp.pad(b_rff, ((0, 0), (0, R_pad - R)))
            w_ff = jnp.pad(w_ff, ((0, R_pad - R), (0, 0)))
        dev['blocks'].append({
            'wqkv': jnp.concatenate([blk['wq'], blk['wk'], blk['wv']],
                                    axis=1).astype(bf16),
            'wo': blk['wo'].astype(bf16), 'bo': blk['bo'],
            'w_rff': w_rff.astype(bf16), 'b_rff': b_rff,
            'w_ff': w_ff.astype(bf16), 'b_ff': blk['b_ff'],
            's1': blk['s1'], 'h1': blk['h1'], 's2': blk['s2'], 'h2': blk['h2'],
        })
    return dev


# ----------------------------- pure-JAX f32 reference --------------------------

def reference_forward(params, in_idx, cfg):
    D, H = cfg['emb_dim'], cfg['n_heads']
    hd = D // H
    B, L = in_idx.shape

    def ln(x, s, h):
        m = x.mean(-1, keepdims=True)
        v = ((x - m) ** 2).mean(-1, keepdims=True)
        return s * ((x - m) / jnp.sqrt(v + 1e-5)) + h

    x = params['tok_emb'][in_idx] + params['pos_emb'][:L]
    mask = jnp.triu(jnp.ones((L, L), bool), 1)
    for p in params['blocks']:
        sc = x
        xn = ln(x, p['s1'], p['h1'])
        q = (xn @ p['wq']).reshape(B, L, H, hd).transpose(0, 2, 1, 3)
        k = (xn @ p['wk']).reshape(B, L, H, hd).transpose(0, 2, 1, 3)
        v = (xn @ p['wv']).reshape(B, L, H, hd).transpose(0, 2, 1, 3)
        s = jnp.einsum('bhqd,bhkd->bhqk', q, k) / math.sqrt(hd)
        s = jnp.where(mask, -jnp.inf, s)
        a = jax.nn.softmax(s, axis=-1)
        ctx = jnp.einsum('bhqk,bhkd->bhqd', a, v).transpose(0, 2, 1, 3).reshape(B, L, D)
        x = sc + ctx @ p['wo'] + p['bo']
        sc = x
        xn = ln(x, p['s2'], p['h2'])
        proj = xn @ p['w_rff'] + p['b_rff']
        feat = math.sqrt(2.0 / cfg['rff_dim']) * jnp.cos(proj)
        x = sc + feat @ p['w_ff'] + p['b_ff']
    x = ln(x, params['f_scale'], params['f_shift'])
    return x @ params['out_head']


# ----------------------------- main -------------------------------------------

if __name__ == "__main__":
    cfg = {
        'vocab_size': 128,
        'context_length': 8,
        'emb_dim': 32,
        'n_heads': 4,
        'n_layers': 2,
        'drop_rate': 0.0,   # dropout = identity
        'qkv_bias': False,
        'sigma': 1.0,
        'rff_dim': 4 * 32,
    }
    key = jax.random.PRNGKey(0)
    pkey, dkey = jax.random.split(key)
    params = init_params(pkey, cfg)
    dev_params = prepare_params(params, cfg)

    B, L = 2, cfg['context_length']
    in_idx = jax.random.randint(dkey, (B, L), 0, cfg['vocab_size'], dtype=jnp.int32)

    logits = gpt_forward(dev_params, in_idx, cfg)
    logits = jax.block_until_ready(logits)

    ref = reference_forward(params, in_idx, cfg)
    assert logits.shape == (B, L, cfg['vocab_size'])
    # Tolerance accounts for bf16 MXU inputs vs. the f32 reference.
    max_err = float(jnp.max(jnp.abs(logits - ref)))
    assert jnp.allclose(logits, ref, rtol=3e-2, atol=3e-2), \
        f"mismatch vs. JAX reference (max abs err {max_err})"

    print("KERNEL_OK")
</pallas_src>

<mosaic_0001>
module attributes {stable_mosaic.version = 11 : i64} {
  func.func @attn_block_kernel(%arg0: i32, %arg1: memref<1x8x32xf32, #tpu.memory_space<vmem>>, %arg2: memref<32x96xbf16, #tpu.memory_space<vmem>>, %arg3: memref<32x32xbf16, #tpu.memory_space<vmem>>, %arg4: memref<1x32xf32, #tpu.memory_space<vmem>>, %arg5: memref<1x32xf32, #tpu.memory_space<vmem>>, %arg6: memref<1x32xf32, #tpu.memory_space<vmem>>, %arg7: memref<1x8x32xf32, #tpu.memory_space<vmem>>) attributes {dimension_semantics = [#tpu.dimension_semantics<parallel>], iteration_bounds = array<i64: 2>, scalar_prefetch = 0 : i64, scratch_operands = 0 : i64, tpu.core_type = #tpu.core_type<tc>, window_params = [{transform_indices = @transform_0, window_bounds = array<i64: 1, 8, 32>}, {pipeline_mode = #tpu.pipeline_mode<synchronous>, transform_indices = @transform_1, window_bounds = array<i64: 32, 96>}, {pipeline_mode = #tpu.pipeline_mode<synchronous>, transform_indices = @transform_2, window_bounds = array<i64: 32, 32>}, {pipeline_mode = #tpu.pipeline_mode<synchronous>, transform_indices = @transform_3, window_bounds = array<i64: 1, 32>}, {pipeline_mode = #tpu.pipeline_mode<synchronous>, transform_indices = @transform_4, window_bounds = array<i64: 1, 32>}, {pipeline_mode = #tpu.pipeline_mode<synchronous>, transform_indices = @transform_5, window_bounds = array<i64: 1, 32>}, {transform_indices = @transform_6, window_bounds = array<i64: 1, 8, 32>}]} {
    %c0 = arith.constant 0 : index
    %c0_0 = arith.constant 0 : index
    %c0_1 = arith.constant 0 : index
    %0 = vector.load %arg1[%c0, %c0_0, %c0_1] : memref<1x8x32xf32, #tpu.memory_space<vmem>>, vector<1x8x32xf32>
    %1 = vector.shape_cast %0 : vector<1x8x32xf32> to vector<8x32xf32>
    %c0_2 = arith.constant 0 : index
    %c0_3 = arith.constant 0 : index
    %2 = vector.load %arg5[%c0_2, %c0_3] : memref<1x32xf32, #tpu.memory_space<vmem>>, vector<1x32xf32>
    %c0_4 = arith.constant 0 : index
    %c0_5 = arith.constant 0 : index
    %3 = vector.load %arg6[%c0_4, %c0_5] : memref<1x32xf32, #tpu.memory_space<vmem>>, vector<1x32xf32>
    %cst = arith.constant dense<0.000000e+00> : vector<8xf32>
    %4 = vector.multi_reduction <add>, %1, %cst [1] : vector<8x32xf32> to vector<8xf32>
    %5 = vector.shape_cast %4 : vector<8xf32> to vector<8x1xf32>
    %cst_6 = arith.constant 3.200000e+01 : f32
    %6 = vector.broadcast %cst_6 : f32 to vector<8x1xf32>
    %7 = arith.divf %5, %6 : vector<8x1xf32>
    %8 = vector.broadcast %7 : vector<8x1xf32> to vector<8x32xf32>
    %9 = arith.subf %1, %8 : vector<8x32xf32>
    %10 = arith.mulf %9, %9 : vector<8x32xf32>
    %cst_7 = arith.constant dense<0.000000e+00> : vector<8xf32>
    %11 = vector.multi_reduction <add>, %10, %cst_7 [1] : vector<8x32xf32> to vector<8xf32>
    %12 = vector.shape_cast %11 : vector<8xf32> to vector<8x1xf32>
    %cst_8 = arith.constant 3.200000e+01 : f32
    %13 = vector.broadcast %cst_8 : f32 to vector<8x1xf32>
    %14 = arith.divf %12, %13 : vector<8x1xf32>
    %15 = vector.broadcast %7 : vector<8x1xf32> to vector<8x32xf32>
    %16 = arith.subf %1, %15 : vector<8x32xf32>
    %cst_9 = arith.constant 9.99999974E-6 : f32
    %17 = vector.broadcast %cst_9 : f32 to vector<8x1xf32>
    %18 = arith.addf %14, %17 : vector<8x1xf32>
    %19 = math.rsqrt %18 : vector<8x1xf32>
    %20 = vector.broadcast %19 : vector<8x1xf32> to vector<8x32xf32>
    %21 = arith.mulf %16, %20 : vector<8x32xf32>
    %22 = vector.broadcast %2 : vector<1x32xf32> to vector<8x32xf32>
    %23 = arith.mulf %22, %21 : vector<8x32xf32>
    %24 = vector.broadcast %3 : vector<1x32xf32> to vector<8x32xf32>
    %25 = arith.addf %23, %24 : vector<8x32xf32>
    %26 = arith.truncf %25 : vector<8x32xf32> to vector<8x32xbf16>
    %c0_10 = arith.constant 0 : index
    %c0_11 = arith.constant 0 : index
    %27 = vector.load %arg2[%c0_10, %c0_11] : memref<32x96xbf16, #tpu.memory_space<vmem>>, vector<32x96xbf16>
    %cst_12 = arith.constant dense<0.000000e+00> : vector<8x96xf32>
    %28 = tpu.matmul %26, %27, %cst_12 {dimension_numbers = #tpu.dot_dimension_numbers<[1], [0], [0], [1], [0, 0, 1, 1], [], []>} : vector<8x32xbf16>, vector<32x96xbf16>, vector<8x96xf32> -> vector<8x96xf32>
    %29 = vector.extract_strided_slice %28 {offsets = [0, 0], sizes = [8, 32], strides = [1, 1]} : vector<8x96xf32> to vector<8x32xf32>
    %cst_13 = arith.constant 0.353553385 : f32
    %30 = vector.broadcast %cst_13 : f32 to vector<8x32xf32>
    %31 = arith.mulf %29, %30 : vector<8x32xf32>
    %32 = vector.extract_strided_slice %28 {offsets = [0, 32], sizes = [8, 32], strides = [1, 1]} : vector<8x96xf32> to vector<8x32xf32>
    %33 = vector.extract_strided_slice %28 {offsets = [0, 64], sizes = [8, 32], strides = [1, 1]} : vector<8x96xf32> to vector<8x32xf32>
    %34 = vector.shape_cast %31 : vector<8x32xf32> to vector<8x4x8xf32>
    %35 = tpu.transpose %34, [1, 0, 2] : vector<8x4x8xf32> -> vector<4x8x8xf32>
    %36 = arith.truncf %35 : vector<4x8x8xf32> to vector<4x8x8xbf16>
    %37 = vector.shape_cast %32 : vector<8x32xf32> to vector<8x4x8xf32>
    %38 = tpu.transpose %37, [1, 0, 2] : vector<8x4x8xf32> -> vector<4x8x8xf32>
    %39 = arith.truncf %38 : vector<4x8x8xf32> to vector<4x8x8xbf16>
    %40 = vector.shape_cast %33 : vector<8x32xf32> to vector<8x4x8xf32>
    %41 = tpu.transpose %40, [1, 0, 2] : vector<8x4x8xf32> -> vector<4x8x8xf32>
    %42 = arith.truncf %41 : vector<4x8x8xf32> to vector<4x8x8xbf16>
    "tpu.trace_start"() <{level = 10 : i32, message = "hqd,hkd->hqk"}> : () -> ()
    %cst_14 = arith.constant dense<0.000000e+00> : vector<4x8x8xf32>
    %43 = tpu.matmul %36, %39, %cst_14 {dimension_numbers = #tpu.dot_dimension_numbers<[2], [2], [1], [1], [0, 0, 0, 1, 1, 1], [0], [0]>} : vector<4x8x8xbf16>, vector<4x8x8xbf16>, vector<4x8x8xf32> -> vector<4x8x8xf32>
    "tpu.trace_stop"() : () -> ()
    %44 = tpu.iota {dimensions = array<i32: 0>} : vector<8x8xi32>
    %45 = tpu.iota {dimensions = array<i32: 1>} : vector<8x8xi32>
    %46 = arith.cmpi sgt, %45, %44 : vector<8x8xi32>
    %47 = vector.shape_cast %46 : vector<8x8xi1> to vector<1x8x8xi1>
    %cst_15 = arith.constant -1.000000e+30 : f32
    %48 = vector.shape_cast %47 : vector<1x8x8xi1> to vector<1x8x8xi1>
    %49 = vector.broadcast %48 : vector<1x8x8xi1> to vector<4x8x8xi1>
    %50 = vector.broadcast %cst_15 : f32 to vector<4x8x8xf32>
    %51 = arith.select %49, %50, %43 : vector<4x8x8xi1>, vector<4x8x8xf32>
    %cst_16 = arith.constant dense<0xFF800000> : vector<4x8xf32>
    %52 = vector.multi_reduction <maximumf>, %51, %cst_16 [2] : vector<4x8x8xf32> to vector<4x8xf32>
    %53 = vector.shape_cast %52 : vector<4x8xf32> to vector<4x8x1xf32>
    %54 = vector.broadcast %53 : vector<4x8x1xf32> to vector<4x8x8xf32>
    %55 = arith.subf %51, %54 : vector<4x8x8xf32>
    %56 = math.exp %55 : vector<4x8x8xf32>
    %cst_17 = arith.constant dense<0.000000e+00> : vector<4x8xf32>
    %57 = vector.multi_reduction <add>, %56, %cst_17 [2] : vector<4x8x8xf32> to vector<4x8xf32>
    %58 = vector.shape_cast %57 : vector<4x8xf32> to vector<4x8x1xf32>
    %59 = vector.broadcast %58 : vector<4x8x1xf32> to vector<4x8x8xf32>
    %60 = arith.divf %56, %59 : vector<4x8x8xf32>
    %61 = arith.truncf %60 : vector<4x8x8xf32> to vector<4x8x8xbf16>
    "tpu.trace_start"() <{level = 10 : i32, message = "hqk,hkd->hqd"}> : () -> ()
    %cst_18 = arith.constant dense<0.000000e+00> : vector<4x8x8xf32>
    %62 = tpu.matmul %61, %42, %cst_18 {dimension_numbers = #tpu.dot_dimension_numbers<[2], [1], [1], [2], [0, 0, 0, 1, 1, 2], [0], [0]>} : vector<4x8x8xbf16>, vector<4x8x8xbf16>, vector<4x8x8xf32> -> vector<4x8x8xf32>
    "tpu.trace_stop"() : () -> ()
    %63 = tpu.transpose %62, [1, 0, 2] : vector<4x8x8xf32> -> vector<8x4x8xf32>
    %64 = vector.shape_cast %63 : vector<8x4x8xf32> to vector<8x32xf32>
    %65 = arith.truncf %64 : vector<8x32xf32> to vector<8x32xbf16>
    %c0_19 = arith.constant 0 : index
    %c0_20 = arith.constant 0 : index
    %66 = vector.load %arg3[%c0_19, %c0_20] : memref<32x32xbf16, #tpu.memory_space<vmem>>, vector<32x32xbf16>
    %cst_21 = arith.constant dense<0.000000e+00> : vector<8x32xf32>
    %67 = tpu.matmul %65, %66, %cst_21 {dimension_numbers = #tpu.dot_dimension_numbers<[1], [0], [0], [1], [0, 0, 1, 1], [], []>} : vector<8x32xbf16>, vector<32x32xbf16>, vector<8x32xf32> -> vector<8x32xf32>
    %c0_22 = arith.constant 0 : index
    %c0_23 = arith.constant 0 : index
    %68 = vector.load %arg4[%c0_22, %c0_23] : memref<1x32xf32, #tpu.memory_space<vmem>>, vector<1x32xf32>
    %69 = vector.broadcast %68 : vector<1x32xf32> to vector<8x32xf32>
    %70 = arith.addf %67, %69 : vector<8x32xf32>
    %71 = arith.addf %1, %70 : vector<8x32xf32>
    %c0_24 = arith.constant 0 : index
    %c0_25 = arith.constant 0 : index
    %c0_26 = arith.constant 0 : index
    %72 = vector.load %arg7[%c0_24, %c0_25, %c0_26] : memref<1x8x32xf32, #tpu.memory_space<vmem>>, vector<1x8x32xf32>
    %73 = vector.shape_cast %72 : vector<1x8x32xf32> to vector<8x32xf32>
    %74 = vector.shape_cast %71 : vector<8x32xf32> to vector<1x8x32xf32>
    tpu.vector_store %arg7[%c0_24, %c0_25, %c0_26], %74 {strides = array<i32>} : memref<1x8x32xf32, #tpu.memory_space<vmem>>, vector<1x8x32xf32>,
    return
  }
  func.func @transform_0(%arg0: i32) -> (i32, i32, i32) {
    %c0_i32 = arith.constant 0 : i32
    %c0_i32_0 = arith.constant 0 : i32
    %c0_i32_1 = arith.constant 0 : i32
    return %arg0, %c0_i32, %c0_i32_0 : i32, i32, i32
  }
  func.func @transform_1(%arg0: i32) -> (i32, i32) {
    %c0_i32 = arith.constant 0 : i32
    %c0_i32_0 = arith.constant 0 : i32
    %c0_i32_1 = arith.constant 0 : i32
    return %c0_i32, %c0_i32_0 : i32, i32
  }
  func.func @transform_2(%arg0: i32) -> (i32, i32) {
    %c0_i32 = arith.constant 0 : i32
    %c0_i32_0 = arith.constant 0 : i32
    %c0_i32_1 = arith.constant 0 : i32
    return %c0_i32, %c0_i32_0 : i32, i32
  }
  func.func @transform_3(%arg0: i32) -> (i32, i32) {
    %c0_i32 = arith.constant 0 : i32
    %c0_i32_0 = arith.constant 0 : i32
    %c0_i32_1 = arith.constant 0 : i32
    return %c0_i32, %c0_i32_0 : i32, i32
  }
  func.func @transform_4(%arg0: i32) -> (i32, i32) {
    %c0_i32 = arith.constant 0 : i32
    %c0_i32_0 = arith.constant 0 : i32
    %c0_i32_1 = arith.constant 0 : i32
    return %c0_i32, %c0_i32_0 : i32, i32
  }
  func.func @transform_5(%arg0: i32) -> (i32, i32) {
    %c0_i32 = arith.constant 0 : i32
    %c0_i32_0 = arith.constant 0 : i32
    %c0_i32_1 = arith.constant 0 : i32
    return %c0_i32, %c0_i32_0 : i32, i32
  }
  func.func @transform_6(%arg0: i32) -> (i32, i32, i32) {
    %c0_i32 = arith.constant 0 : i32
    %c0_i32_0 = arith.constant 0 : i32
    %c0_i32_1 = arith.constant 0 : i32
    return %arg0, %c0_i32, %c0_i32_0 : i32, i32, i32
  }
}

</mosaic_0001>

<llo_original>
// kernel: tpu_custom_call.1
$region0: #{tpu_custom_call.1}
  #allocation0 [shape = 'u32[]', space=smem, size = 0x4, offset = 0x4, fixed_abs, tag = 'smem constant byte address 0x4 - core index']
  #allocation1 [shape = 'u32[144,128]{1,0:T(1,128)}', space=vmem, size = 0x12000, scoped, tag = 'internal scratch']
  %s0 = inlined_call_operand.hbm [shape: f32[2,8,32], index: 0, kind: input, shape index: {}]
  %s1 = inlined_call_operand.hbm [shape: bf16[32,96], index: 1, kind: input, shape index: {}]
  %s2 = inlined_call_operand.hbm [shape: bf16[32,32], index: 2, kind: input, shape index: {}]
  %s3 = inlined_call_operand.hbm [shape: f32[1,32], index: 3, kind: input, shape index: {}]
  %s4 = inlined_call_operand.hbm [shape: f32[1,32], index: 4, kind: input, shape index: {}]
  %s5 = inlined_call_operand.hbm [shape: f32[1,32], index: 5, kind: input, shape index: {}]
  %s6 = inlined_call_operand.hbm [shape: f32[2,8,32], index: 6, kind: output, shape index: {}]
  %s7 = sld [smem:[#allocation0]]
  $region81: #{tpu_custom_call.1} parent=0
    _
  %s9 = ssub.s32 1, %s7
  %s10 = scalar_select 0, %s9, %s7
  $region1: #{tpu_custom_call.1} parent=0
    #allocation2 [shape = 'u8[8192]{0}', space=vmem, size = 0x2000, scoped, tag = 'input window, operand 0']
    #allocation3 [shape = 's32[2]{0}', space=sflag, size = 0x8, scoped, tag = 'scoped memory for tpu_custom_call.1']
    #allocation4 [shape = 's32[2]{0}', space=sflag, size = 0x8, scoped, tag = 'scoped memory for tpu_custom_call.1']
    #allocation5 [shape = 'u8[8192]{0}', space=vmem, size = 0x2000, scoped, tag = 'input window, operand 1, single buffered']
    #allocation6 [shape = 's32[1]{0}', space=sflag, size = 0x4, scoped, tag = 'scoped memory for tpu_custom_call.1']
    #allocation7 [shape = 'u8[8192]{0}', space=vmem, size = 0x2000, scoped, tag = 'input window, operand 2, single buffered']
    #allocation8 [shape = 'u8[512]{0}', space=vmem, size = 0x400, scoped, tag = 'input window, operand 3, single buffered']
    #allocation9 [shape = 's32[1]{0}', space=sflag, size = 0x4, scoped, tag = 'scoped memory for tpu_custom_call.1']
    #allocation10 [shape = 'u8[512]{0}', space=vmem, size = 0x400, scoped, tag = 'input window, operand 4, single buffered']
    #allocation11 [shape = 'u8[512]{0}', space=vmem, size = 0x400, scoped, tag = 'input window, operand 5, single buffered']
    #allocation12 [shape = 's32[1]{0}', space=sflag, size = 0x4, scoped, tag = 'scoped memory for tpu_custom_call.1']
    #allocation13 [shape = 'u8[8192]{0}', space=vmem, size = 0x2000, scoped, tag = 'output window, operand 0']
    %11 = vsyncpa [#allocation3], 0
    %s12 = scalar_lea.sflag [#allocation3], 1
    %13 = vsyncpa %s12, 0
    %14 = vsyncpa [#allocation6], 0
    %15 = vsyncpa [#allocation9], 0
    %16 = vsyncpa [#allocation12], 0
    %17 = vsyncpa [#allocation4], 0
    %s18 = scalar_lea.sflag [#allocation4], 1
    %19 = vsyncpa %s18, 0
    loop: start=0, step=1, limit=4
    $region2: #{tpu_custom_call.1} parent=1 // loop_pre_header
      _
    $region3: #{tpu_custom_call.1} parent=1 // loop_header
      %s21 = sphi 0, %s25
      %p22 = scmp.ge.s32.totalorder %s21, 4
      %s31 = sphi 0, %s33
      %s34 = sphi 0, %s31
      %s35 = sphi 0, %s34
      %s51 = sphi 0, %s35
      %s55 = sphi 0, %s55
      %s57 = sphi 0, %s55
      %s58 = sphi 0, %s57
      %s72 = sphi 0, %s58
      %s76 = sphi 0, %s76
      %s78 = sphi 0, %s76
      %s79 = sphi 0, %s78
      %s93 = sphi 0, %s79
      %s97 = sphi 0, %s97
      %s99 = sphi 0, %s97
      %s100 = sphi 0, %s99
      %s114 = sphi 0, %s100
      %s118 = sphi 0, %s118
      %s120 = sphi 0, %s118
      %s121 = sphi 0, %s120
      %s135 = sphi 0, %s121
      %s139 = sphi 0, %s139
      %s141 = sphi 0, %s139
      %s142 = sphi 0, %s141
      %s156 = sphi 0, %s142
      %s162 = sphi 0, %s164
      %s165 = sphi 0, %s162
      %s166 = sphi 0, %s165
      %s182 = sphi 0, %s166
    $region4: #{tpu_custom_call.1} parent=1 // loop_header_branch
      %24 = sbr.rel (%p22) target = $region8
    $region5: #{tpu_custom_call.1} parent=1 // loop_body
      %s26 = ssub.s32 %s21, 1
      %s27 = ssub.s32 %s21, 2
      %s28 = sadd.s32 %s21, 1
      %s29 = ssub.s32 %s21, %s28
      %p30 = scmp.eq.s32.totalorder %s29, 0
      %s32 = sadd.s32 %s31, 1
      %s33 = scalar_select %p30, %s31, %s32
      %p36 = pneg %p30
      %p37 = scmp.eq.s32.totalorder %s21, 1
      %p38 = por %p36, %p37
      %p39 = scmp.ne.s32.totalorder %s31, %s34
      %p40 = scmp.eq.s32.totalorder %s21, 0
      %p41 = por %p39, %p40
      %p42 = scmp.ne.s32.totalorder %s31, %s34
      %p43 = scmp.eq.s32.totalorder %s26, 1
      %p44 = por %p42, %p43
      %p45 = scmp.ne.s32.totalorder %s34, %s35
      %p46 = scmp.eq.s32.totalorder %s26, 0
      %p47 = por %p45, %p46
      %p48 = scmp.ne.s32.totalorder %s34, %s35
      %p49 = scmp.eq.s32.totalorder %s27, 1
      %p50 = por %p48, %p49
      %p52 = scmp.ne.s32.totalorder %s35, %s51
      %p53 = scmp.eq.s32.totalorder %s27, 0
      %p54 = por %p52, %p53
      %s56 = sadd.s32 %s55, 1
      %p59 = scmp.eq.s32.totalorder %s21, 1
      %p60 = scmp.ne.s32.totalorder %s55, %s57
      %p61 = scmp.eq.s32.totalorder %s21, 0
      %p62 = por %p60, %p61
      %p63 = scmp.ne.s32.totalorder %s55, %s57
      %p64 = scmp.eq.s32.totalorder %s26, 1
      %p65 = por %p63, %p64
      %p66 = scmp.ne.s32.totalorder %s57, %s58
      %p67 = scmp.eq.s32.totalorder %s26, 0
      %p68 = por %p66, %p67
      %p69 = scmp.ne.s32.totalorder %s57, %s58
      %p70 = scmp.eq.s32.totalorder %s27, 1
      %p71 = por %p69, %p70
      %p73 = scmp.ne.s32.totalorder %s58, %s72
      %p74 = scmp.eq.s32.totalorder %s27, 0
      %p75 = por %p73, %p74
      %s77 = sadd.s32 %s76, 1
      %p80 = scmp.eq.s32.totalorder %s21, 1
      %p81 = scmp.ne.s32.totalorder %s76, %s78
      %p82 = scmp.eq.s32.totalorder %s21, 0
      %p83 = por %p81, %p82
      %p84 = scmp.ne.s32.totalorder %s76, %s78
      %p85 = scmp.eq.s32.totalorder %s26, 1
      %p86 = por %p84, %p85
      %p87 = scmp.ne.s32.totalorder %s78, %s79
      %p88 = scmp.eq.s32.totalorder %s26, 0
      %p89 = por %p87, %p88
      %p90 = scmp.ne.s32.totalorder %s78, %s79
      %p91 = scmp.eq.s32.totalorder %s27, 1
      %p92 = por %p90, %p91
      %p94 = scmp.ne.s32.totalorder %s79, %s93
      %p95 = scmp.eq.s32.totalorder %s27, 0
      %p96 = por %p94, %p95
      %s98 = sadd.s32 %s97, 1
      %p101 = scmp.eq.s32.totalorder %s21, 1
      %p102 = scmp.ne.s32.totalorder %s97, %s99
      %p103 = scmp.eq.s32.totalorder %s21, 0
      %p104 = por %p102, %p103
      %p105 = scmp.ne.s32.totalorder %s97, %s99
      %p106 = scmp.eq.s32.totalorder %s26, 1
      %p107 = por %p105, %p106
      %p108 = scmp.ne.s32.totalorder %s99, %s100
      %p109 = scmp.eq.s32.totalorder %s26, 0
      %p110 = por %p108, %p109
      %p111 = scmp.ne.s32.totalorder %s99, %s100
      %p112 = scmp.eq.s32.totalorder %s27, 1
      %p113 = por %p111, %p112
      %p115 = scmp.ne.s32.totalorder %s100, %s114
      %p116 = scmp.eq.s32.totalorder %s27, 0
      %p117 = por %p115, %p116
      %s119 = sadd.s32 %s118, 1
      %p122 = scmp.eq.s32.totalorder %s21, 1
      %p123 = scmp.ne.s32.totalorder %s118, %s120
      %p124 = scmp.eq.s32.totalorder %s21, 0
      %p125 = por %p123, %p124
      %p126 = scmp.ne.s32.totalorder %s118, %s120
      %p127 = scmp.eq.s32.totalorder %s26, 1
      %p128 = por %p126, %p127
      %p129 = scmp.ne.s32.totalorder %s120, %s121
      %p130 = scmp.eq.s32.totalorder %s26, 0
      %p131 = por %p129, %p130
      %p132 = scmp.ne.s32.totalorder %s120, %s121
      %p133 = scmp.eq.s32.totalorder %s27, 1
      %p134 = por %p132, %p133
      %p136 = scmp.ne.s32.totalorder %s121, %s135
      %p137 = scmp.eq.s32.totalorder %s27, 0
      %p138 = por %p136, %p137
      %s140 = sadd.s32 %s139, 1
      %p143 = scmp.eq.s32.totalorder %s21, 1
      %p144 = scmp.ne.s32.totalorder %s139, %s141
      %p145 = scmp.eq.s32.totalorder %s21, 0
      %p146 = por %p144, %p145
      %p147 = scmp.ne.s32.totalorder %s139, %s141
      %p148 = scmp.eq.s32.totalorder %s26, 1
      %p149 = por %p147, %p148
      %p150 = scmp.ne.s32.totalorder %s141, %s142
      %p151 = scmp.eq.s32.totalorder %s26, 0
      %p152 = por %p150, %p151
      %p153 = scmp.ne.s32.totalorder %s141, %s142
      %p154 = scmp.eq.s32.totalorder %s27, 1
      %p155 = por %p153, %p154
      %p157 = scmp.ne.s32.totalorder %s142, %s156
      %p158 = scmp.eq.s32.totalorder %s27, 0
      %p159 = por %p157, %p158
      %s160 = ssub.s32 %s21, %s28
      %p161 = scmp.eq.s32.totalorder %s160, 0
      %s163 = sadd.s32 %s162, 1
      %s164 = scalar_select %p161, %s162, %s163
      %p167 = pneg %p161
      %p168 = scmp.eq.s32.totalorder %s21, 1
      %p169 = por %p167, %p168
      %p170 = scmp.ne.s32.totalorder %s162, %s165
      %p171 = scmp.eq.s32.totalorder %s21, 0
      %p172 = por %p170, %p171
      %p173 = scmp.ne.s32.totalorder %s162, %s165
      %p174 = scmp.eq.s32.totalorder %s26, 1
      %p175 = por %p173, %p174
      %p176 = scmp.ne.s32.totalorder %s165, %s166
      %p177 = scmp.eq.s32.totalorder %s26, 0
      %p178 = por %p176, %p177
      %p179 = scmp.ne.s32.totalorder %s165, %s166
      %p180 = scmp.eq.s32.totalorder %s27, 1
      %p181 = por %p179, %p180
      %p183 = scmp.ne.s32.totalorder %s166, %s182
      %p184 = scmp.eq.s32.totalorder %s27, 0
      %p185 = por %p183, %p184
      %p186 = scmp.le.s32.totalorder 1, %s21
      %p187 = scmp.lt.s32.totalorder %s21, 3
      %p188 = pnand %p186, %p187
      %p189 = pneg %p188
      // Predicated region
      $region9: #{tpu_custom_call.1} parent=5 // pred_check
        _
      $region10: #{tpu_custom_call.1} parent=5 // pred_check_branch
        %191 = sbr.rel (%p188) target = $region12
      $region11: #{tpu_custom_call.1} parent=5 // pred_region
        %s192 = ssub.s32 %s21, 1
        // Predicated region
        $region13: #{tpu_custom_call.1} parent=11 // pred_check
          %p193 = pneg %p68
        $region14: #{tpu_custom_call.1} parent=11 // pred_check_branch
          %195 = sbr.rel (%p193) target = $region16
        $region15: #{tpu_custom_call.1} parent=11 // pred_region
          %s197 = ssub.s32 256, 256
          %198 = vsyncadd [#allocation6], %s197
          %s199 = sshll.u32 [#allocation5], 4
          %s200 = int_to_ptr.vmem [resolvable:$true] %s199
          %205 = dma.hbm_to_vmem [thread:$0]  %s1, 256, %s200, [#allocation6], 64, 64, 4
        $region16: #{tpu_custom_call.1} parent=11 // pred_fallthru
          _
        // Predicated region
        $region17: #{tpu_custom_call.1} parent=11 // pred_check
          %p206 = pneg %p89
        $region18: #{tpu_custom_call.1} parent=11 // pred_check_branch
          %208 = sbr.rel (%p206) target = $region20
        $region19: #{tpu_custom_call.1} parent=11 // pred_region
          %s210 = ssub.s32 256, 256
          %211 = vsyncadd [#allocation6], %s210
          %s212 = sshll.u32 [#allocation7], 4
          %s213 = int_to_ptr.vmem [resolvable:$true] %s212
          %218 = dma.hbm_to_vmem [thread:$0]  %s2, 256, %s213, [#allocation6], 64, 64, 4
        $region20: #{tpu_custom_call.1} parent=11 // pred_fallthru
          _
        // Predicated region
        $region21: #{tpu_custom_call.1} parent=11 // pred_check
          %p219 = pneg %p110
        $region22: #{tpu_custom_call.1} parent=11 // pred_check_branch
          %221 = sbr.rel (%p219) target = $region24
        $region23: #{tpu_custom_call.1} parent=11 // pred_region
          %s223 = ssub.s32 16, 16
          %224 = vsyncadd [#allocation9], %s223
          %s226 = sshll.u32 [#allocation8], 4
          %s227 = int_to_ptr.vmem [resolvable:$true] %s226
          %229 = dma.hbm_to_vmem [thread:$0]  %s3, 16, %s227, [#allocation9]
        $region24: #{tpu_custom_call.1} parent=11 // pred_fallthru
          _
        // Predicated region
        $region25: #{tpu_custom_call.1} parent=11 // pred_check
          %p230 = pneg %p131
        $region26: #{tpu_custom_call.1} parent=11 // pred_check_branch
          %232 = sbr.rel (%p230) target = $region28
        $region27: #{tpu_custom_call.1} parent=11 // pred_region
          %s234 = ssub.s32 16, 16
          %235 = vsyncadd [#allocation9], %s234
          %s237 = sshll.u32 [#allocation10], 4
          %s238 = int_to_ptr.vmem [resolvable:$true] %s237
          %240 = dma.hbm_to_vmem [thread:$0]  %s4, 16, %s238, [#allocation9]
        $region28: #{tpu_custom_call.1} parent=11 // pred_fallthru
          _
        // Predicated region
        $region29: #{tpu_custom_call.1} parent=11 // pred_check
          %p241 = pneg %p152
        $region30: #{tpu_custom_call.1} parent=11 // pred_check_branch
          %243 = sbr.rel (%p241) target = $region32
        $region31: #{tpu_custom_call.1} parent=11 // pred_region
          %s245 = ssub.s32 16, 16
          %246 = vsyncadd [#allocation12], %s245
          %s248 = sshll.u32 [#allocation11], 4
          %s249 = int_to_ptr.vmem [resolvable:$true] %s248
          %251 = dma.hbm_to_vmem [thread:$0]  %s5, 16, %s249, [#allocation12]
        $region32: #{tpu_custom_call.1} parent=11 // pred_fallthru
          _
      $region12: #{tpu_custom_call.1} parent=5 // pred_fallthru
        _
      %p252 = scmp.lt.s32.totalorder %s21, 2
      // Predicated region
      $region33: #{tpu_custom_call.1} parent=5 // pred_check
        %p253 = pneg %p252
      $region34: #{tpu_custom_call.1} parent=5 // pred_check_branch
        %255 = sbr.rel (%p253) target = $region36
      $region35: #{tpu_custom_call.1} parent=5 // pred_region
        // Predicated region
        $region37: #{tpu_custom_call.1} parent=35 // pred_check
          %p256 = pneg %p41
        $region38: #{tpu_custom_call.1} parent=35 // pred_check_branch
          %258 = sbr.rel (%p256) target = $region40
        $region39: #{tpu_custom_call.1} parent=35 // pred_region
          %s259 = sand.u32 %s31, 1
          %s260 = scalar_lea.sflag [#allocation3], %s259
          %s261 = sand.u32 %s31, 1
          %s262 = smul.addr %s261, 8
          %s263 = scalar_lea.vmem [#allocation2], %s262
          %s265 = ssub.s32 128, 128
          %266 = vsyncadd %s260, %s265
          %s267 = smul.addr %s21, 128
          %s268 = scalar_lea.hbm %s0, %s267
          %s270 = sshll.u32 %s263, 4
          %s271 = int_to_ptr.vmem [resolvable:$true] %s270
          %273 = dma.hbm_to_vmem [thread:$0]  %s268, 128, %s271, %s260
        $region40: #{tpu_custom_call.1} parent=35 // pred_fallthru
          _
      $region36: #{tpu_custom_call.1} parent=5 // pred_fallthru
        _
      %p274 = scmp.le.s32.totalorder 1, %s21
      %p275 = scmp.lt.s32.totalorder %s21, 3
      %p276 = pnand %p274, %p275
      %p277 = pneg %p276
      // Predicated region
      $region41: #{tpu_custom_call.1} parent=5 // pred_check
        _
      $region42: #{tpu_custom_call.1} parent=5 // pred_check_branch
        %279 = sbr.rel (%p276) target = $region44
      $region43: #{tpu_custom_call.1} parent=5 // pred_region
        %s280 = ssub.s32 %s21, 1
        %s281 = sand.u32 %s34, 1
        %s282 = scalar_lea.sflag [#allocation3], %s281
        %s283 = sand.u32 %s34, 1
        %s284 = smul.addr %s283, 8
        %s285 = scalar_lea.vmem [#allocation2], %s284
        // Predicated region
        $region45: #{tpu_custom_call.1} parent=43 // pred_check
          %p286 = pneg %p47
        $region46: #{tpu_custom_call.1} parent=43 // pred_check_branch
          %288 = sbr.rel (%p286) target = $region48
        $region47: #{tpu_custom_call.1} parent=43 // pred_region
          %289 = dma.done %s282, 128
        $region48: #{tpu_custom_call.1} parent=43 // pred_fallthru
          _
        // Predicated region
        $region49: #{tpu_custom_call.1} parent=43 // pred_check
          %p290 = pneg %p68
        $region50: #{tpu_custom_call.1} parent=43 // pred_check_branch
          %292 = sbr.rel (%p290) target = $region52
        $region51: #{tpu_custom_call.1} parent=43 // pred_region
          %293 = dma.done [#allocation6], 256
        $region52: #{tpu_custom_call.1} parent=43 // pred_fallthru
          _
        // Predicated region
        $region53: #{tpu_custom_call.1} parent=43 // pred_check
          %p294 = pneg %p89
        $region54: #{tpu_custom_call.1} parent=43 // pred_check_branch
          %296 = sbr.rel (%p294) target = $region56
        $region55: #{tpu_custom_call.1} parent=43 // pred_region
          %297 = dma.done [#allocation6], 256
        $region56: #{tpu_custom_call.1} parent=43 // pred_fallthru
          _
        // Predicated region
        $region57: #{tpu_custom_call.1} parent=43 // pred_check
          %p298 = pneg %p110
        $region58: #{tpu_custom_call.1} parent=43 // pred_check_branch
          %300 = sbr.rel (%p298) target = $region60
        $region59: #{tpu_custom_call.1} parent=43 // pred_region
          %301 = dma.done [#allocation9], 16
        $region60: #{tpu_custom_call.1} parent=43 // pred_fallthru
          _
        // Predicated region
        $region61: #{tpu_custom_call.1} parent=43 // pred_check
          %p302 = pneg %p131
        $region62: #{tpu_custom_call.1} parent=43 // pred_check_branch
          %304 = sbr.rel (%p302) target = $region64
        $region63: #{tpu_custom_call.1} parent=43 // pred_region
          %305 = dma.done [#allocation9], 16
        $region64: #{tpu_custom_call.1} parent=43 // pred_fallthru
          _
        // Predicated region
        $region65: #{tpu_custom_call.1} parent=43 // pred_check
          %p306 = pneg %p152
        $region66: #{tpu_custom_call.1} parent=43 // pred_check_branch
          %308 = sbr.rel (%p306) target = $region68
        $region67: #{tpu_custom_call.1} parent=43 // pred_region
          %309 = dma.done [#allocation12], 16
        $region68: #{tpu_custom_call.1} parent=43 // pred_fallthru
          _
        %s310 = sand.u32 %s34, 1
        %s311 = scalar_lea.sflag [#allocation3], %s310
        %s312 = sand.u32 %s34, 1
        %s313 = smul.addr %s312, 8
        %s314 = scalar_lea.vmem [#allocation2], %s313
        %p315 = pneg %p47
        %p316 = pneg %p44
        %p317 = pneg %p68
        %p318 = pneg %p65
        %p319 = pneg %p89
        %p320 = pneg %p86
        %p321 = pneg %p110
        %p322 = pneg %p107
        %p323 = pneg %p131
        %p324 = pneg %p128
        %p325 = pneg %p152
        %p326 = pneg %p149
        %p327 = pneg %p178
        %p328 = pneg %p175
        %s329 = sand.u32 %s165, 1
        %s330 = scalar_lea.sflag [#allocation4], %s329
        %s331 = sand.u32 %s165, 1
        %s332 = smul.addr %s331, 8
        %s333 = scalar_lea.vmem [#allocation13], %s332
        %v335 = vld [vmem:[%s285] sm:$0xff]
        %v336 = vld [vmem:[#allocation10] sm:$0x1]
        %v337 = vld [vmem:[#allocation11] sm:$0x1]
        %vm338 = vcmask 261120
        %v339 = vsel %vm338, %v335, 0.0
        %340 = vadd.xlane.f32.xlu0 %v339
        %v341 = vpop.xlane.xlu0 %340
        %v342 = vrcp.pop 32.0
        %v343 = vmul.f32 %v341, %v342
        %v344 = vsub.f32 %v335, %v343
        %v345 = vmul.f32 %v344, %v344
        %v346 = vsel %vm338, %v345, 0.0
        %347 = vadd.xlane.f32.xlu0 %v346
        %v348 = vpop.xlane.xlu0 %347
        %v349 = vmul.f32 %v348, %v342
        %v350 = vadd.f32 %v349, 1e-05
        %v351 = vrsqrt.pop %v350
        %v352 = vmul.f32 %v344, %v351
        %v354 = vlaneseq
        %v355 = vshrl.u32 %v354, 7
        %v356 = vsub.s32 0, %v355
        %v357 = vrot.slane %v336, %v356
        %v359 = vmul.f32 %v357, %v352
        %v361 = vlaneseq
        %v362 = vshrl.u32 %v361, 7
        %v363 = vsub.s32 0, %v362
        %v364 = vrot.slane %v337, %v363
        %v366 = vadd.f32 %v359, %v364
        %v367 = vpack.c.bf16 %v366, %v366
        %v368 = vld [vmem:[#allocation5] sm:$0xf]
        %v369 = vld [vmem:[#allocation5 + $0x4] sm:$0xf]
        %v370 = vld [vmem:[#allocation5 + $0x8] sm:$0xf]
        %v371 = vld [vmem:[#allocation5 + $0xc] sm:$0xf]
        %v376 = vunpack.c.l.b16 %v368
        %v377 = vunpack.c.l.b16 %v369
        %v378 = vunpack.c.l.b16 %v370
        %v379 = vunpack.c.l.b16 %v371
        %v380 = vpack.c.b16 %v377, %v376
        %v381 = vpack.c.b16 %v379, %v378
        %v385 = vsel %vm338, %v367, 0
        %387 = vmatprep.subr.bf16.mxu0 0
        %388 = vmatpush1.bf16.msra.mxu0 %v380
        %389 = vmatprep.subr.bf16.mxu0 0
        %390 = vmatpush1.bf16.msra.mxu0 %v381
        %391 = vmatprep.subr.bf16.mxu0 0
        %392 = vmatpush1.bf16.msra.mxu0 0
        %393 = vmatprep.subr.bf16.mxu0 0
        %394 = vmatpush1.bf16.msra.mxu0 0
        %395 = vmatprep.subr.bf16.mxu0 0
        %396 = vmatpush1.bf16.msra.mxu0 0
        %397 = vmatprep.subr.bf16.mxu0 0
        %398 = vmatpush1.bf16.msra.mxu0 0
        %399 = vmatprep.subr.bf16.mxu0 0
        %400 = vmatpush1.bf16.msra.mxu0 0
        %401 = vmatprep.subr.bf16.mxu0 0
        %402 = vmatpush1.bf16.msra.mxu0 0
        %403 = vmatprep.subr.bf16.mxu0 0
        %404 = vmatpush1.bf16.msra.mxu0 0
        %405 = vmatprep.subr.bf16.mxu0 0
        %406 = vmatpush1.bf16.msra.mxu0 0
        %407 = vmatprep.subr.bf16.mxu0 0
        %408 = vmatpush1.bf16.msra.mxu0 0
        %409 = vmatprep.subr.bf16.mxu0 0
        %410 = vmatpush1.bf16.msra.mxu0 0
        %411 = vmatprep.subr.bf16.mxu0 0
        %412 = vmatpush1.bf16.msra.mxu0 0
        %413 = vmatprep.subr.bf16.mxu0 0
        %414 = vmatpush1.bf16.msra.mxu0 0
        %415 = vmatprep.subr.bf16.mxu0 0
        %416 = vmatpush1.bf16.msra.mxu0 0
        %417 = vmatprep.subr.bf16.mxu0 0
        %418 = vmatpush1.bf16.msra.mxu0 0
        %419 = vmatprep.mubr.bf16.mxu0 0
        %420 = vmatmul.mubr.bf16.gmra.mrb[0].mxu0 %v385
        %v421 = vpop.f32.mrb[0].mxu0
        %v422 = vadd.f32 0.0, %v421
        %v423 = vpop.f32.mrb[0].mxu0
        %v424 = vpop.f32.mrb[0].mxu0
        %v425 = vpop.f32.mrb[0].mxu0
        %426 = vdwg.mxu0
        %v427 = vmul.f32 %v422, 0.35355338
        %429 = vrot.lane.b32.xlu0 %v427, 120
        %v430 = vpop.permute.xlu0 %429
        %432 = vrot.lane.b32.xlu0 %v427, 112
        %v433 = vpop.permute.xlu0 %432
        %435 = vrot.lane.b32.xlu0 %v427, 104
        %v436 = vpop.permute.xlu0 %435
        %v438 = vcombine.low %v427, %v433
        %v439 = vcombine.high %v427, %v433
        %v441 = vunpack.c.l.s4 1983009808
        %v442 = vunpack.c.0.s8 %v441
        %v443 = vlaneseq
        %v444 = vshrl.u32 %v443, 7
        %v445 = vsub.s32 %v442, %v444
        %v446 = vrot.slane %v438, %v445
        %v448 = vunpack.c.l.s4 1983009808
        %v449 = vunpack.c.0.s8 %v448
        %v450 = vlaneseq
        %v451 = vshrl.u32 %v450, 7
        %v452 = vsub.s32 %v449, %v451
        %v453 = vrot.slane %v439, %v452
        %v454 = vcombine.low %v430, %v436
        %v455 = vcombine.high %v430, %v436
        %v457 = vunpack.c.l.s4 1983009808
        %v458 = vunpack.c.0.s8 %v457
        %v459 = vlaneseq
        %v460 = vshrl.u32 %v459, 7
        %v461 = vsub.s32 %v458, %v460
        %v462 = vrot.slane %v454, %v461
        %v464 = vunpack.c.l.s4 1983009808
        %v465 = vunpack.c.0.s8 %v464
        %v466 = vlaneseq
        %v467 = vshrl.u32 %v466, 7
        %v468 = vsub.s32 %v465, %v467
        %v469 = vrot.slane %v455, %v468
        %v470 = vcombine.low %v446, %v462
        %v471 = vcombine.high %v446, %v462
        %v473 = vunpack.c.l.s4 1934713408
        %v474 = vunpack.c.0.s8 %v473
        %v475 = vlaneseq
        %v476 = vshrl.u32 %v475, 7
        %v477 = vsub.s32 %v474, %v476
        %v478 = vrot.slane %v470, %v477
        %v480 = vunpack.c.l.s4 1934713408
        %v481 = vunpack.c.0.s8 %v480
        %v482 = vlaneseq
        %v483 = vshrl.u32 %v482, 7
        %v484 = vsub.s32 %v481, %v483
        %v485 = vrot.slane %v471, %v484
        %v486 = vcombine.low %v453, %v469
        %v487 = vcombine.high %v453, %v469
        %v489 = vunpack.c.l.s4 1934713408
        %v490 = vunpack.c.0.s8 %v489
        %v491 = vlaneseq
        %v492 = vshrl.u32 %v491, 7
        %v493 = vsub.s32 %v490, %v492
        %v494 = vrot.slane %v486, %v493
        %v496 = vunpack.c.l.s4 1934713408
        %v497 = vunpack.c.0.s8 %v496
        %v498 = vlaneseq
        %v499 = vshrl.u32 %v498, 7
        %v500 = vsub.s32 %v497, %v499
        %v501 = vrot.slane %v487, %v500
        %v502 = vcombine.high %v478, 0.0
        %v503 = vcombine.high %v485, 0.0
        %v504 = vcombine.high %v494, 0.0
        %v505 = vcombine.high %v501, 0.0
        %v506 = vcombine.low %v478, %v485
        %v508 = vunpack.c.l.s4 1983009808
        %v509 = vunpack.c.0.s8 %v508
        %v510 = vlaneseq
        %v511 = vshrl.u32 %v510, 7
        %v512 = vsub.s32 %v509, %v511
        %v513 = vrot.slane %v506, %v512
        %v514 = vcombine.low %v502, %v503
        %v516 = vunpack.c.l.s4 1983009808
        %v517 = vunpack.c.0.s8 %v516
        %v518 = vlaneseq
        %v519 = vshrl.u32 %v518, 7
        %v520 = vsub.s32 %v517, %v519
        %v521 = vrot.slane %v514, %v520
        %v522 = vcombine.low %v494, %v501
        %v524 = vunpack.c.l.s4 1983009808
        %v525 = vunpack.c.0.s8 %v524
        %v526 = vlaneseq
        %v527 = vshrl.u32 %v526, 7
        %v528 = vsub.s32 %v525, %v527
        %v529 = vrot.slane %v522, %v528
        %v530 = vcombine.low %v504, %v505
        %v532 = vunpack.c.l.s4 1983009808
        %v533 = vunpack.c.0.s8 %v532
        %v534 = vlaneseq
        %v535 = vshrl.u32 %v534, 7
        %v536 = vsub.s32 %v533, %v535
        %v537 = vrot.slane %v530, %v536
        %v538 = vcombine.low %v513, %v521
        %v539 = vcombine.high %v513, %v521
        %v541 = vunpack.c.l.s4 1934713408
        %v542 = vunpack.c.0.s8 %v541
        %v543 = vlaneseq
        %v544 = vshrl.u32 %v543, 7
        %v545 = vsub.s32 %v542, %v544
        %v546 = vrot.slane %v538, %v545
        %v548 = vunpack.c.l.s4 1934713408
        %v549 = vunpack.c.0.s8 %v548
        %v550 = vlaneseq
        %v551 = vshrl.u32 %v550, 7
        %v552 = vsub.s32 %v549, %v551
        %v553 = vrot.slane %v539, %v552
        %v554 = vcombine.low %v529, %v537
        %v555 = vcombine.high %v529, %v537
        %v557 = vunpack.c.l.s4 1934713408
        %v558 = vunpack.c.0.s8 %v557
        %v559 = vlaneseq
        %v560 = vshrl.u32 %v559, 7
        %v561 = vsub.s32 %v558, %v560
        %v562 = vrot.slane %v554, %v561
        %v564 = vunpack.c.l.s4 1934713408
        %v565 = vunpack.c.0.s8 %v564
        %v566 = vlaneseq
        %v567 = vshrl.u32 %v566, 7
        %v568 = vsub.s32 %v565, %v567
        %v569 = vrot.slane %v555, %v568
        %v570 = vcombine.low %v546, %v562
        %v571 = vcombine.high %v546, %v562
        %v572 = vcombine.low %v553, %v569
        %v573 = vcombine.high %v553, %v569
        %v574 = vpack.c.bf16 %v570, %v570
        %v575 = vpack.c.bf16 %v571, %v571
        %v576 = vpack.c.bf16 %v572, %v572
        %v577 = vpack.c.bf16 %v573, %v573
        %579 = vrot.lane.b32.xlu0 %v422, 120
        %v580 = vpop.permute.xlu0 %579
        %581 = vrot.lane.b32.xlu0 %v422, 112
        %v582 = vpop.permute.xlu0 %581
        %583 = vrot.lane.b32.xlu0 %v422, 104
        %v584 = vpop.permute.xlu0 %583
        %585 = vrot.lane.b32.xlu0 %v422, 96
        %v586 = vpop.permute.xlu0 %585
        %587 = vrot.lane.b32.xlu0 %v580, 96
        %v588 = vpop.permute.xlu0 %587
        %589 = vrot.lane.b32.xlu0 %v582, 96
        %v590 = vpop.permute.xlu0 %589
        %591 = vrot.lane.b32.xlu0 %v584, 96
        %v592 = vpop.permute.xlu0 %591
        %v597 = vcombine.low %v586, %v590
        %v598 = vcombine.high %v586, %v590
        %v600 = vunpack.c.l.s4 1983009808
        %v601 = vunpack.c.0.s8 %v600
        %v602 = vlaneseq
        %v603 = vshrl.u32 %v602, 7
        %v604 = vsub.s32 %v601, %v603
        %v605 = vrot.slane %v597, %v604
        %v607 = vunpack.c.l.s4 1983009808
        %v608 = vunpack.c.0.s8 %v607
        %v609 = vlaneseq
        %v610 = vshrl.u32 %v609, 7
        %v611 = vsub.s32 %v608, %v610
        %v612 = vrot.slane %v598, %v611
        %v613 = vcombine.low %v588, %v592
        %v614 = vcombine.high %v588, %v592
        %v616 = vunpack.c.l.s4 1983009808
        %v617 = vunpack.c.0.s8 %v616
        %v618 = vlaneseq
        %v619 = vshrl.u32 %v618, 7
        %v620 = vsub.s32 %v617, %v619
        %v621 = vrot.slane %v613, %v620
        %v623 = vunpack.c.l.s4 1983009808
        %v624 = vunpack.c.0.s8 %v623
        %v625 = vlaneseq
        %v626 = vshrl.u32 %v625, 7
        %v627 = vsub.s32 %v624, %v626
        %v628 = vrot.slane %v614, %v627
        %v629 = vcombine.low %v605, %v621
        %v630 = vcombine.high %v605, %v621
        %v632 = vunpack.c.l.s4 1934713408
        %v633 = vunpack.c.0.s8 %v632
        %v634 = vlaneseq
        %v635 = vshrl.u32 %v634, 7
        %v636 = vsub.s32 %v633, %v635
        %v637 = vrot.slane %v629, %v636
        %v639 = vunpack.c.l.s4 1934713408
        %v640 = vunpack.c.0.s8 %v639
        %v641 = vlaneseq
        %v642 = vshrl.u32 %v641, 7
        %v643 = vsub.s32 %v640, %v642
        %v644 = vrot.slane %v630, %v643
        %v645 = vcombine.low %v612, %v628
        %v646 = vcombine.high %v612, %v628
        %v648 = vunpack.c.l.s4 1934713408
        %v649 = vunpack.c.0.s8 %v648
        %v650 = vlaneseq
        %v651 = vshrl.u32 %v650, 7
        %v652 = vsub.s32 %v649, %v651
        %v653 = vrot.slane %v645, %v652
        %v655 = vunpack.c.l.s4 1934713408
        %v656 = vunpack.c.0.s8 %v655
        %v657 = vlaneseq
        %v658 = vshrl.u32 %v657, 7
        %v659 = vsub.s32 %v656, %v658
        %v660 = vrot.slane %v646, %v659
        %v661 = vcombine.high %v637, 0.0
        %v662 = vcombine.high %v644, 0.0
        %v663 = vcombine.high %v653, 0.0
        %v664 = vcombine.high %v660, 0.0
        %v665 = vcombine.low %v637, %v644
        %v667 = vunpack.c.l.s4 1983009808
        %v668 = vunpack.c.0.s8 %v667
        %v669 = vlaneseq
        %v670 = vshrl.u32 %v669, 7
        %v671 = vsub.s32 %v668, %v670
        %v672 = vrot.slane %v665, %v671
        %v673 = vcombine.low %v661, %v662
        %v675 = vunpack.c.l.s4 1983009808
        %v676 = vunpack.c.0.s8 %v675
        %v677 = vlaneseq
        %v678 = vshrl.u32 %v677, 7
        %v679 = vsub.s32 %v676, %v678
        %v680 = vrot.slane %v673, %v679
        %v681 = vcombine.low %v653, %v660
        %v683 = vunpack.c.l.s4 1983009808
        %v684 = vunpack.c.0.s8 %v683
        %v685 = vlaneseq
        %v686 = vshrl.u32 %v685, 7
        %v687 = vsub.s32 %v684, %v686
        %v688 = vrot.slane %v681, %v687
        %v689 = vcombine.low %v663, %v664
        %v691 = vunpack.c.l.s4 1983009808
        %v692 = vunpack.c.0.s8 %v691
        %v693 = vlaneseq
        %v694 = vshrl.u32 %v693, 7
        %v695 = vsub.s32 %v692, %v694
        %v696 = vrot.slane %v689, %v695
        %v697 = vcombine.low %v672, %v680
        %v698 = vcombine.high %v672, %v680
        %v700 = vunpack.c.l.s4 1934713408
        %v701 = vunpack.c.0.s8 %v700
        %v702 = vlaneseq
        %v703 = vshrl.u32 %v702, 7
        %v704 = vsub.s32 %v701, %v703
        %v705 = vrot.slane %v697, %v704
        %v707 = vunpack.c.l.s4 1934713408
        %v708 = vunpack.c.0.s8 %v707
        %v709 = vlaneseq
        %v710 = vshrl.u32 %v709, 7
        %v711 = vsub.s32 %v708, %v710
        %v712 = vrot.slane %v698, %v711
        %v713 = vcombine.low %v688, %v696
        %v714 = vcombine.high %v688, %v696
        %v716 = vunpack.c.l.s4 1934713408
        %v717 = vunpack.c.0.s8 %v716
        %v718 = vlaneseq
        %v719 = vshrl.u32 %v718, 7
        %v720 = vsub.s32 %v717, %v719
        %v721 = vrot.slane %v713, %v720
        %v723 = vunpack.c.l.s4 1934713408
        %v724 = vunpack.c.0.s8 %v723
        %v725 = vlaneseq
        %v726 = vshrl.u32 %v725, 7
        %v727 = vsub.s32 %v724, %v726
        %v728 = vrot.slane %v714, %v727
        %v729 = vcombine.low %v705, %v721
        %v730 = vcombine.high %v705, %v721
        %v731 = vcombine.low %v712, %v728
        %v732 = vcombine.high %v712, %v728
        %v733 = vpack.c.bf16 %v729, %v729
        %v734 = vpack.c.bf16 %v730, %v730
        %v735 = vpack.c.bf16 %v731, %v731
        %v736 = vpack.c.bf16 %v732, %v732
        %737 = vrot.lane.b32.xlu0 %v422, 64
        %v738 = vpop.permute.xlu0 %737
        %739 = vrot.lane.b32.xlu0 %v580, 64
        %v740 = vpop.permute.xlu0 %739
        %741 = vrot.lane.b32.xlu0 %v582, 64
        %v742 = vpop.permute.xlu0 %741
        %743 = vrot.lane.b32.xlu0 %v584, 64
        %v744 = vpop.permute.xlu0 %743
        %v749 = vcombine.low %v738, %v742
        %v750 = vcombine.high %v738, %v742
        %v752 = vunpack.c.l.s4 1983009808
        %v753 = vunpack.c.0.s8 %v752
        %v754 = vlaneseq
        %v755 = vshrl.u32 %v754, 7
        %v756 = vsub.s32 %v753, %v755
        %v757 = vrot.slane %v749, %v756
        %v759 = vunpack.c.l.s4 1983009808
        %v760 = vunpack.c.0.s8 %v759
        %v761 = vlaneseq
        %v762 = vshrl.u32 %v761, 7
        %v763 = vsub.s32 %v760, %v762
        %v764 = vrot.slane %v750, %v763
        %v765 = vcombine.low %v740, %v744
        %v766 = vcombine.high %v740, %v744
        %v768 = vunpack.c.l.s4 1983009808
        %v769 = vunpack.c.0.s8 %v768
        %v770 = vlaneseq
        %v771 = vshrl.u32 %v770, 7
        %v772 = vsub.s32 %v769, %v771
        %v773 = vrot.slane %v765, %v772
        %v775 = vunpack.c.l.s4 1983009808
        %v776 = vunpack.c.0.s8 %v775
        %v777 = vlaneseq
        %v778 = vshrl.u32 %v777, 7
        %v779 = vsub.s32 %v776, %v778
        %v780 = vrot.slane %v766, %v779
        %v781 = vcombine.low %v757, %v773
        %v782 = vcombine.high %v757, %v773
        %v784 = vunpack.c.l.s4 1934713408
        %v785 = vunpack.c.0.s8 %v784
        %v786 = vlaneseq
        %v787 = vshrl.u32 %v786, 7
        %v788 = vsub.s32 %v785, %v787
        %v789 = vrot.slane %v781, %v788
        %v791 = vunpack.c.l.s4 1934713408
        %v792 = vunpack.c.0.s8 %v791
        %v793 = vlaneseq
        %v794 = vshrl.u32 %v793, 7
        %v795 = vsub.s32 %v792, %v794
        %v796 = vrot.slane %v782, %v795
        %v797 = vcombine.low %v764, %v780
        %v798 = vcombine.high %v764, %v780
        %v800 = vunpack.c.l.s4 1934713408
        %v801 = vunpack.c.0.s8 %v800
        %v802 = vlaneseq
        %v803 = vshrl.u32 %v802, 7
        %v804 = vsub.s32 %v801, %v803
        %v805 = vrot.slane %v797, %v804
        %v807 = vunpack.c.l.s4 1934713408
        %v808 = vunpack.c.0.s8 %v807
        %v809 = vlaneseq
        %v810 = vshrl.u32 %v809, 7
        %v811 = vsub.s32 %v808, %v810
        %v812 = vrot.slane %v798, %v811
        %v813 = vcombine.high %v789, 0.0
        %v814 = vcombine.high %v796, 0.0
        %v815 = vcombine.high %v805, 0.0
        %v816 = vcombine.high %v812, 0.0
        %v817 = vcombine.low %v789, %v796
        %v819 = vunpack.c.l.s4 1983009808
        %v820 = vunpack.c.0.s8 %v819
        %v821 = vlaneseq
        %v822 = vshrl.u32 %v821, 7
        %v823 = vsub.s32 %v820, %v822
        %v824 = vrot.slane %v817, %v823
        %v825 = vcombine.low %v813, %v814
        %v827 = vunpack.c.l.s4 1983009808
        %v828 = vunpack.c.0.s8 %v827
        %v829 = vlaneseq
        %v830 = vshrl.u32 %v829, 7
        %v831 = vsub.s32 %v828, %v830
        %v832 = vrot.slane %v825, %v831
        %v833 = vcombine.low %v805, %v812
        %v835 = vunpack.c.l.s4 1983009808
        %v836 = vunpack.c.0.s8 %v835
        %v837 = vlaneseq
        %v838 = vshrl.u32 %v837, 7
        %v839 = vsub.s32 %v836, %v838
        %v840 = vrot.slane %v833, %v839
        %v841 = vcombine.low %v815, %v816
        %v843 = vunpack.c.l.s4 1983009808
        %v844 = vunpack.c.0.s8 %v843
        %v845 = vlaneseq
        %v846 = vshrl.u32 %v845, 7
        %v847 = vsub.s32 %v844, %v846
        %v848 = vrot.slane %v841, %v847
        %v849 = vcombine.low %v824, %v832
        %v850 = vcombine.high %v824, %v832
        %v852 = vunpack.c.l.s4 1934713408
        %v853 = vunpack.c.0.s8 %v852
        %v854 = vlaneseq
        %v855 = vshrl.u32 %v854, 7
        %v856 = vsub.s32 %v853, %v855
        %v857 = vrot.slane %v849, %v856
        %v859 = vunpack.c.l.s4 1934713408
        %v860 = vunpack.c.0.s8 %v859
        %v861 = vlaneseq
        %v862 = vshrl.u32 %v861, 7
        %v863 = vsub.s32 %v860, %v862
        %v864 = vrot.slane %v850, %v863
        %v865 = vcombine.low %v840, %v848
        %v866 = vcombine.high %v840, %v848
        %v868 = vunpack.c.l.s4 1934713408
        %v869 = vunpack.c.0.s8 %v868
        %v870 = vlaneseq
        %v871 = vshrl.u32 %v870, 7
        %v872 = vsub.s32 %v869, %v871
        %v873 = vrot.slane %v865, %v872
        %v875 = vunpack.c.l.s4 1934713408
        %v876 = vunpack.c.0.s8 %v875
        %v877 = vlaneseq
        %v878 = vshrl.u32 %v877, 7
        %v879 = vsub.s32 %v876, %v878
        %v880 = vrot.slane %v866, %v879
        %v881 = vcombine.low %v857, %v873
        %v882 = vcombine.high %v857, %v873
        %v883 = vcombine.low %v864, %v880
        %v884 = vcombine.high %v864, %v880
        %v885 = vpack.c.bf16 %v881, %v881
        %v886 = vpack.c.bf16 %v882, %v882
        %v887 = vpack.c.bf16 %v883, %v883
        %v888 = vpack.c.bf16 %v884, %v884
        %vm889 = vcmask 64512
        %v891 = vsel %vm889, %v574, 0
        %v894 = vsel %vm889, %v733, 0
        %896 = vmatprep.subr.bf16.mxu0 0
        %897 = vmatpush1.bf16.xpose.msra.mxu0 %v894
        %898 = vmatprep.subr.bf16.mxu0 0
        %899 = vmatpush1.bf16.xpose.msra.mxu0 0
        %900 = vmatprep.subr.bf16.mxu0 0
        %901 = vmatpush1.bf16.xpose.msra.mxu0 0
        %902 = vmatprep.subr.bf16.mxu0 0
        %903 = vmatpush1.bf16.xpose.msra.mxu0 0
        %904 = vmatprep.subr.bf16.mxu0 0
        %905 = vmatpush1.bf16.xpose.msra.mxu0 0
        %906 = vmatprep.subr.bf16.mxu0 0
        %907 = vmatpush1.bf16.xpose.msra.mxu0 0
        %908 = vmatprep.subr.bf16.mxu0 0
        %909 = vmatpush1.bf16.xpose.msra.mxu0 0
        %910 = vmatprep.subr.bf16.mxu0 0
        %911 = vmatpush1.bf16.xpose.msra.mxu0 0
        %912 = vmatprep.subr.bf16.mxu0 0
        %913 = vmatpush1.bf16.xpose.msra.mxu0 0
        %914 = vmatprep.subr.bf16.mxu0 0
        %915 = vmatpush1.bf16.xpose.msra.mxu0 0
        %916 = vmatprep.subr.bf16.mxu0 0
        %917 = vmatpush1.bf16.xpose.msra.mxu0 0
        %918 = vmatprep.subr.bf16.mxu0 0
        %919 = vmatpush1.bf16.xpose.msra.mxu0 0
        %920 = vmatprep.subr.bf16.mxu0 0
        %921 = vmatpush1.bf16.xpose.msra.mxu0 0
        %922 = vmatprep.subr.bf16.mxu0 0
        %923 = vmatpush1.bf16.xpose.msra.mxu0 0
        %924 = vmatprep.subr.bf16.mxu0 0
        %925 = vmatpush1.bf16.xpose.msra.mxu0 0
        %926 = vmatprep.subr.bf16.mxu0 0
        %927 = vmatpush1.bf16.xpose.msra.mxu0 0
        %928 = vmatprep.mubr.bf16.mxu0 0
        %929 = vmatmul.mubr.bf16.gmra.mrb[0].mxu0 %v891
        %v930 = vpop.f32.mrb[0].mxu0
        %v931 = vadd.f32 0.0, %v930
        %v932 = vpop.f32.mrb[0].mxu0
        %v933 = vpop.f32.mrb[0].mxu0
        %v934 = vpop.f32.mrb[0].mxu0
        %935 = vdwg.mxu0
        %v937 = vsel %vm889, %v575, 0
        %v940 = vsel %vm889, %v734, 0
        %942 = vmatprep.subr.bf16.mxu0 0
        %943 = vmatpush1.bf16.xpose.msra.mxu0 %v940
        %944 = vmatprep.subr.bf16.mxu0 0
        %945 = vmatpush1.bf16.xpose.msra.mxu0 0
        %946 = vmatprep.subr.bf16.mxu0 0
        %947 = vmatpush1.bf16.xpose.msra.mxu0 0
        %948 = vmatprep.subr.bf16.mxu0 0
        %949 = vmatpush1.bf16.xpose.msra.mxu0 0
        %950 = vmatprep.subr.bf16.mxu0 0
        %951 = vmatpush1.bf16.xpose.msra.mxu0 0
        %952 = vmatprep.subr.bf16.mxu0 0
        %953 = vmatpush1.bf16.xpose.msra.mxu0 0
        %954 = vmatprep.subr.bf16.mxu0 0
        %955 = vmatpush1.bf16.xpose.msra.mxu0 0
        %956 = vmatprep.subr.bf16.mxu0 0
        %957 = vmatpush1.bf16.xpose.msra.mxu0 0
        %958 = vmatprep.subr.bf16.mxu0 0
        %959 = vmatpush1.bf16.xpose.msra.mxu0 0
        %960 = vmatprep.subr.bf16.mxu0 0
        %961 = vmatpush1.bf16.xpose.msra.mxu0 0
        %962 = vmatprep.subr.bf16.mxu0 0
        %963 = vmatpush1.bf16.xpose.msra.mxu0 0
        %964 = vmatprep.subr.bf16.mxu0 0
        %965 = vmatpush1.bf16.xpose.msra.mxu0 0
        %966 = vmatprep.subr.bf16.mxu0 0
        %967 = vmatpush1.bf16.xpose.msra.mxu0 0
        %968 = vmatprep.subr.bf16.mxu0 0
        %969 = vmatpush1.bf16.xpose.msra.mxu0 0
        %970 = vmatprep.subr.bf16.mxu0 0
        %971 = vmatpush1.bf16.xpose.msra.mxu0 0
        %972 = vmatprep.subr.bf16.mxu0 0
        %973 = vmatpush1.bf16.xpose.msra.mxu0 0
        %974 = vmatprep.mubr.bf16.mxu0 0
        %975 = vmatmul.mubr.bf16.gmra.mrb[0].mxu0 %v937
        %v976 = vpop.f32.mrb[0].mxu0
        %v977 = vadd.f32 0.0, %v976
        %v978 = vpop.f32.mrb[0].mxu0
        %v979 = vpop.f32.mrb[0].mxu0
        %v980 = vpop.f32.mrb[0].mxu0
        %981 = vdwg.mxu0
        %v983 = vsel %vm889, %v576, 0
        %v986 = vsel %vm889, %v735, 0
        %988 = vmatprep.subr.bf16.mxu0 0
        %989 = vmatpush1.bf16.xpose.msra.mxu0 %v986
        %990 = vmatprep.subr.bf16.mxu0 0
        %991 = vmatpush1.bf16.xpose.msra.mxu0 0
        %992 = vmatprep.subr.bf16.mxu0 0
        %993 = vmatpush1.bf16.xpose.msra.mxu0 0
        %994 = vmatprep.subr.bf16.mxu0 0
        %995 = vmatpush1.bf16.xpose.msra.mxu0 0
        %996 = vmatprep.subr.bf16.mxu0 0
        %997 = vmatpush1.bf16.xpose.msra.mxu0 0
        %998 = vmatprep.subr.bf16.mxu0 0
        %999 = vmatpush1.bf16.xpose.msra.mxu0 0
        %1000 = vmatprep.subr.bf16.mxu0 0
        %1001 = vmatpush1.bf16.xpose.msra.mxu0 0
        %1002 = vmatprep.subr.bf16.mxu0 0
        %1003 = vmatpush1.bf16.xpose.msra.mxu0 0
        %1004 = vmatprep.subr.bf16.mxu0 0
        %1005 = vmatpush1.bf16.xpose.msra.mxu0 0
        %1006 = vmatprep.subr.bf16.mxu0 0
        %1007 = vmatpush1.bf16.xpose.msra.mxu0 0
        %1008 = vmatprep.subr.bf16.mxu0 0
        %1009 = vmatpush1.bf16.xpose.msra.mxu0 0
        %1010 = vmatprep.subr.bf16.mxu0 0
        %1011 = vmatpush1.bf16.xpose.msra.mxu0 0
        %1012 = vmatprep.subr.bf16.mxu0 0
        %1013 = vmatpush1.bf16.xpose.msra.mxu0 0
        %1014 = vmatprep.subr.bf16.mxu0 0
        %1015 = vmatpush1.bf16.xpose.msra.mxu0 0
        %1016 = vmatprep.subr.bf16.mxu0 0
        %1017 = vmatpush1.bf16.xpose.msra.mxu0 0
        %1018 = vmatprep.subr.bf16.mxu0 0
        %1019 = vmatpush1.bf16.xpose.msra.mxu0 0
        %1020 = vmatprep.mubr.bf16.mxu0 0
        %1021 = vmatmul.mubr.bf16.gmra.mrb[0].mxu0 %v983
        %v1022 = vpop.f32.mrb[0].mxu0
        %v1023 = vadd.f32 0.0, %v1022
        %v1024 = vpop.f32.mrb[0].mxu0
        %v1025 = vpop.f32.mrb[0].mxu0
        %v1026 = vpop.f32.mrb[0].mxu0
        %1027 = vdwg.mxu0
        %v1029 = vsel %vm889, %v577, 0
        %v1032 = vsel %vm889, %v736, 0
        %1034 = vmatprep.subr.bf16.mxu0 0
        %1035 = vmatpush1.bf16.xpose.msra.mxu0 %v1032
        %1036 = vmatprep.subr.bf16.mxu0 0
        %1037 = vmatpush1.bf16.xpose.msra.mxu0 0
        %1038 = vmatprep.subr.bf16.mxu0 0
        %1039 = vmatpush1.bf16.xpose.msra.mxu0 0
        %1040 = vmatprep.subr.bf16.mxu0 0
        %1041 = vmatpush1.bf16.xpose.msra.mxu0 0
        %1042 = vmatprep.subr.bf16.mxu0 0
        %1043 = vmatpush1.bf16.xpose.msra.mxu0 0
        %1044 = vmatprep.subr.bf16.mxu0 0
        %1045 = vmatpush1.bf16.xpose.msra.mxu0 0
        %1046 = vmatprep.subr.bf16.mxu0 0
        %1047 = vmatpush1.bf16.xpose.msra.mxu0 0
        %1048 = vmatprep.subr.bf16.mxu0 0
        %1049 = vmatpush1.bf16.xpose.msra.mxu0 0
        %1050 = vmatprep.subr.bf16.mxu0 0
        %1051 = vmatpush1.bf16.xpose.msra.mxu0 0
        %1052 = vmatprep.subr.bf16.mxu0 0
        %1053 = vmatpush1.bf16.xpose.msra.mxu0 0
        %1054 = vmatprep.subr.bf16.mxu0 0
        %1055 = vmatpush1.bf16.xpose.msra.mxu0 0
        %1056 = vmatprep.subr.bf16.mxu0 0
        %1057 = vmatpush1.bf16.xpose.msra.mxu0 0
        %1058 = vmatprep.subr.bf16.mxu0 0
        %1059 = vmatpush1.bf16.xpose.msra.mxu0 0
        %1060 = vmatprep.subr.bf16.mxu0 0
        %1061 = vmatpush1.bf16.xpose.msra.mxu0 0
        %1062 = vmatprep.subr.bf16.mxu0 0
        %1063 = vmatpush1.bf16.xpose.msra.mxu0 0
        %1064 = vmatprep.subr.bf16.mxu0 0
        %1065 = vmatpush1.bf16.xpose.msra.mxu0 0
        %1066 = vmatprep.mubr.bf16.mxu0 0
        %1067 = vmatmul.mubr.bf16.gmra.mrb[0].mxu0 %v1029
        %v1068 = vpop.f32.mrb[0].mxu0
        %v1069 = vadd.f32 0.0, %v1068
        %v1070 = vpop.f32.mrb[0].mxu0
        %v1071 = vpop.f32.mrb[0].mxu0
        %v1072 = vpop.f32.mrb[0].mxu0
        %1073 = vdwg.mxu0
        %v1074 = vlaneseq
        %v1075 = vshrl.u32 %v1074, 7
        %v1076 = vlaneseq
        %v1077 = vand.u32 %v1076, 127
        %vm1078 = vcmp.gt.s32.totalorder %v1077, %v1075
        %v1079 = vsel %vm1078, 1, 0
        %vm1080 = vcmp.eq.s32.totalorder %v1079, 1
        %v1081 = vsel %vm1080, -1e+30, %v931
        %v1082 = vsel %vm1080, -1e+30, %v977
        %v1083 = vsel %vm1080, -1e+30, %v1023
        %v1084 = vsel %vm1080, -1e+30, %v1069
        %v1085 = vsel %vm889, %v1081, -inf
        %1086 = vmax.xlane.f32.xlu0 %v1085
        %v1087 = vpop.xlane.xlu0 %1086
        %v1088 = vsel %vm889, %v1082, -inf
        %1089 = vmax.xlane.f32.xlu0 %v1088
        %v1090 = vpop.xlane.xlu0 %1089
        %v1091 = vsel %vm889, %v1083, -inf
        %1092 = vmax.xlane.f32.xlu0 %v1091
        %v1093 = vpop.xlane.xlu0 %1092
        %v1094 = vsel %vm889, %v1084, -inf
        %1095 = vmax.xlane.f32.xlu0 %v1094
        %v1096 = vpop.xlane.xlu0 %1095
        %v1097 = vsub.f32 %v1081, %v1087
        %v1098 = vsub.f32 %v1082, %v1090
        %v1099 = vsub.f32 %v1083, %v1093
        %v1100 = vsub.f32 %v1084, %v1096
        %v1101 = vmul.f32 %v1097, 1.442695
        %v1102 = vpow.pop %v1101
        %v1103 = vmul.f32 %v1098, 1.442695
        %v1104 = vpow.pop %v1103
        %v1105 = vmul.f32 %v1099, 1.442695
        %v1106 = vpow.pop %v1105
        %v1107 = vmul.f32 %v1100, 1.442695
        %v1108 = vpow.pop %v1107
        %v1109 = vsel %vm889, %v1102, 0.0
        %1110 = vadd.xlane.f32.xlu0 %v1109
        %v1111 = vpop.xlane.xlu0 %1110
        %v1112 = vsel %vm889, %v1104, 0.0
        %1113 = vadd.xlane.f32.xlu0 %v1112
        %v1114 = vpop.xlane.xlu0 %1113
        %v1115 = vsel %vm889, %v1106, 0.0
        %1116 = vadd.xlane.f32.xlu0 %v1115
        %v1117 = vpop.xlane.xlu0 %1116
        %v1118 = vsel %vm889, %v1108, 0.0
        %1119 = vadd.xlane.f32.xlu0 %v1118
        %v1120 = vpop.xlane.xlu0 %1119
        %v1121 = vrcp.pop %v1111
        %v1122 = vmul.f32 %v1102, %v1121
        %v1123 = vrcp.pop %v1114
        %v1124 = vmul.f32 %v1104, %v1123
        %v1125 = vrcp.pop %v1117
        %v1126 = vmul.f32 %v1106, %v1125
        %v1127 = vrcp.pop %v1120
        %v1128 = vmul.f32 %v1108, %v1127
        %v1129 = vpack.c.bf16 %v1122, %v1122
        %v1130 = vpack.c.bf16 %v1124, %v1124
        %v1131 = vpack.c.bf16 %v1126, %v1126
        %v1132 = vpack.c.bf16 %v1128, %v1128
        %v1134 = vsel %vm889, %v1129, 0
        %vm1136 = vcmask 1043456
        %v1138 = vsel %vm1136, %v885, 0
        %1140 = vmatprep.subr.bf16.mxu0 0
        %1141 = vmatpush1.bf16.msra.mxu0 %v1138
        %1142 = vmatprep.subr.bf16.mxu0 0
        %1143 = vmatpush1.bf16.msra.mxu0 0
        %1144 = vmatprep.subr.bf16.mxu0 0
        %1145 = vmatpush1.bf16.msra.mxu0 0
        %1146 = vmatprep.subr.bf16.mxu0 0
        %1147 = vmatpush1.bf16.msra.mxu0 0
        %1148 = vmatprep.subr.bf16.mxu0 0
        %1149 = vmatpush1.bf16.msra.mxu0 0
        %1150 = vmatprep.subr.bf16.mxu0 0
        %1151 = vmatpush1.bf16.msra.mxu0 0
        %1152 = vmatprep.subr.bf16.mxu0 0
        %1153 = vmatpush1.bf16.msra.mxu0 0
        %1154 = vmatprep.subr.bf16.mxu0 0
        %1155 = vmatpush1.bf16.msra.mxu0 0
        %1156 = vmatprep.subr.bf16.mxu0 0
        %1157 = vmatpush1.bf16.msra.mxu0 0
        %1158 = vmatprep.subr.bf16.mxu0 0
        %1159 = vmatpush1.bf16.msra.mxu0 0
        %1160 = vmatprep.subr.bf16.mxu0 0
        %1161 = vmatpush1.bf16.msra.mxu0 0
        %1162 = vmatprep.subr.bf16.mxu0 0
        %1163 = vmatpush1.bf16.msra.mxu0 0
        %1164 = vmatprep.subr.bf16.mxu0 0
        %1165 = vmatpush1.bf16.msra.mxu0 0
        %1166 = vmatprep.subr.bf16.mxu0 0
        %1167 = vmatpush1.bf16.msra.mxu0 0
        %1168 = vmatprep.subr.bf16.mxu0 0
        %1169 = vmatpush1.bf16.msra.mxu0 0
        %1170 = vmatprep.subr.bf16.mxu0 0
        %1171 = vmatpush1.bf16.msra.mxu0 0
        %1172 = vmatprep.mubr.bf16.mxu0 0
        %1173 = vmatmul.mubr.bf16.gmra.mrb[0].mxu0 %v1134
        %v1174 = vpop.f32.mrb[0].mxu0
        %v1175 = vadd.f32 0.0, %v1174
        %v1176 = vpop.f32.mrb[0].mxu0
        %v1177 = vpop.f32.mrb[0].mxu0
        %v1178 = vpop.f32.mrb[0].mxu0
        %1179 = vdwg.mxu0
        %v1181 = vsel %vm889, %v1130, 0
        %v1184 = vsel %vm1136, %v886, 0
        %1186 = vmatprep.subr.bf16.mxu0 0
        %1187 = vmatpush1.bf16.msra.mxu0 %v1184
        %1188 = vmatprep.subr.bf16.mxu0 0
        %1189 = vmatpush1.bf16.msra.mxu0 0
        %1190 = vmatprep.subr.bf16.mxu0 0
        %1191 = vmatpush1.bf16.msra.mxu0 0
        %1192 = vmatprep.subr.bf16.mxu0 0
        %1193 = vmatpush1.bf16.msra.mxu0 0
        %1194 = vmatprep.subr.bf16.mxu0 0
        %1195 = vmatpush1.bf16.msra.mxu0 0
        %1196 = vmatprep.subr.bf16.mxu0 0
        %1197 = vmatpush1.bf16.msra.mxu0 0
        %1198 = vmatprep.subr.bf16.mxu0 0
        %1199 = vmatpush1.bf16.msra.mxu0 0
        %1200 = vmatprep.subr.bf16.mxu0 0
        %1201 = vmatpush1.bf16.msra.mxu0 0
        %1202 = vmatprep.subr.bf16.mxu0 0
        %1203 = vmatpush1.bf16.msra.mxu0 0
        %1204 = vmatprep.subr.bf16.mxu0 0
        %1205 = vmatpush1.bf16.msra.mxu0 0
        %1206 = vmatprep.subr.bf16.mxu0 0
        %1207 = vmatpush1.bf16.msra.mxu0 0
        %1208 = vmatprep.subr.bf16.mxu0 0
        %1209 = vmatpush1.bf16.msra.mxu0 0
        %1210 = vmatprep.subr.bf16.mxu0 0
        %1211 = vmatpush1.bf16.msra.mxu0 0
        %1212 = vmatprep.subr.bf16.mxu0 0
        %1213 = vmatpush1.bf16.msra.mxu0 0
        %1214 = vmatprep.subr.bf16.mxu0 0
        %1215 = vmatpush1.bf16.msra.mxu0 0
        %1216 = vmatprep.subr.bf16.mxu0 0
        %1217 = vmatpush1.bf16.msra.mxu0 0
        %1218 = vmatprep.mubr.bf16.mxu0 0
        %1219 = vmatmul.mubr.bf16.gmra.mrb[0].mxu0 %v1181
        %v1220 = vpop.f32.mrb[0].mxu0
        %v1221 = vadd.f32 0.0, %v1220
        %v1222 = vpop.f32.mrb[0].mxu0
        %v1223 = vpop.f32.mrb[0].mxu0
        %v1224 = vpop.f32.mrb[0].mxu0
        %1225 = vdwg.mxu0
        %v1227 = vsel %vm889, %v1131, 0
        %v1230 = vsel %vm1136, %v887, 0
        %1232 = vmatprep.subr.bf16.mxu0 0
        %1233 = vmatpush1.bf16.msra.mxu0 %v1230
        %1234 = vmatprep.subr.bf16.mxu0 0
        %1235 = vmatpush1.bf16.msra.mxu0 0
        %1236 = vmatprep.subr.bf16.mxu0 0
        %1237 = vmatpush1.bf16.msra.mxu0 0
        %1238 = vmatprep.subr.bf16.mxu0 0
        %1239 = vmatpush1.bf16.msra.mxu0 0
        %1240 = vmatprep.subr.bf16.mxu0 0
        %1241 = vmatpush1.bf16.msra.mxu0 0
        %1242 = vmatprep.subr.bf16.mxu0 0
        %1243 = vmatpush1.bf16.msra.mxu0 0
        %1244 = vmatprep.subr.bf16.mxu0 0
        %1245 = vmatpush1.bf16.msra.mxu0 0
        %1246 = vmatprep.subr.bf16.mxu0 0
        %1247 = vmatpush1.bf16.msra.mxu0 0
        %1248 = vmatprep.subr.bf16.mxu0 0
        %1249 = vmatpush1.bf16.msra.mxu0 0
        %1250 = vmatprep.subr.bf16.mxu0 0
        %1251 = vmatpush1.bf16.msra.mxu0 0
        %1252 = vmatprep.subr.bf16.mxu0 0
        %1253 = vmatpush1.bf16.msra.mxu0 0
        %1254 = vmatprep.subr.bf16.mxu0 0
        %1255 = vmatpush1.bf16.msra.mxu0 0
        %1256 = vmatprep.subr.bf16.mxu0 0
        %1257 = vmatpush1.bf16.msra.mxu0 0
        %1258 = vmatprep.subr.bf16.mxu0 0
        %1259 = vmatpush1.bf16.msra.mxu0 0
        %1260 = vmatprep.subr.bf16.mxu0 0
        %1261 = vmatpush1.bf16.msra.mxu0 0
        %1262 = vmatprep.subr.bf16.mxu0 0
        %1263 = vmatpush1.bf16.msra.mxu0 0
        %1264 = vmatprep.mubr.bf16.mxu0 0
        %1265 = vmatmul.mubr.bf16.gmra.mrb[0].mxu0 %v1227
        %v1266 = vpop.f32.mrb[0].mxu0
        %v1267 = vadd.f32 0.0, %v1266
        %v1268 = vpop.f32.mrb[0].mxu0
        %v1269 = vpop.f32.mrb[0].mxu0
        %v1270 = vpop.f32.mrb[0].mxu0
        %1271 = vdwg.mxu0
        %v1273 = vsel %vm889, %v1132, 0
        %v1276 = vsel %vm1136, %v888, 0
        %1278 = vmatprep.subr.bf16.mxu0 0
        %1279 = vmatpush1.bf16.msra.mxu0 %v1276
        %1280 = vmatprep.subr.bf16.mxu0 0
        %1281 = vmatpush1.bf16.msra.mxu0 0
        %1282 = vmatprep.subr.bf16.mxu0 0
        %1283 = vmatpush1.bf16.msra.mxu0 0
        %1284 = vmatprep.subr.bf16.mxu0 0
        %1285 = vmatpush1.bf16.msra.mxu0 0
        %1286 = vmatprep.subr.bf16.mxu0 0
        %1287 = vmatpush1.bf16.msra.mxu0 0
        %1288 = vmatprep.subr.bf16.mxu0 0
        %1289 = vmatpush1.bf16.msra.mxu0 0
        %1290 = vmatprep.subr.bf16.mxu0 0
        %1291 = vmatpush1.bf16.msra.mxu0 0
        %1292 = vmatprep.subr.bf16.mxu0 0
        %1293 = vmatpush1.bf16.msra.mxu0 0
        %1294 = vmatprep.subr.bf16.mxu0 0
        %1295 = vmatpush1.bf16.msra.mxu0 0
        %1296 = vmatprep.subr.bf16.mxu0 0
        %1297 = vmatpush1.bf16.msra.mxu0 0
        %1298 = vmatprep.subr.bf16.mxu0 0
        %1299 = vmatpush1.bf16.msra.mxu0 0
        %1300 = vmatprep.subr.bf16.mxu0 0
        %1301 = vmatpush1.bf16.msra.mxu0 0
        %1302 = vmatprep.subr.bf16.mxu0 0
        %1303 = vmatpush1.bf16.msra.mxu0 0
        %1304 = vmatprep.subr.bf16.mxu0 0
        %1305 = vmatpush1.bf16.msra.mxu0 0
        %1306 = vmatprep.subr.bf16.mxu0 0
        %1307 = vmatpush1.bf16.msra.mxu0 0
        %1308 = vmatprep.subr.bf16.mxu0 0
        %1309 = vmatpush1.bf16.msra.mxu0 0
        %1310 = vmatprep.mubr.bf16.mxu0 0
        %1311 = vmatmul.mubr.bf16.gmra.mrb[0].mxu0 %v1273
        %v1312 = vpop.f32.mrb[0].mxu0
        %v1313 = vadd.f32 0.0, %v1312
        %v1314 = vpop.f32.mrb[0].mxu0
        %v1315 = vpop.f32.mrb[0].mxu0
        %v1316 = vpop.f32.mrb[0].mxu0
        %1317 = vdwg.mxu0
        %v1318 = vcombine.low %v1175, %v1267
        %v1319 = vcombine.high %v1175, %v1267
        %v1321 = vunpack.c.l.s4 1983009808
        %v1322 = vunpack.c.0.s8 %v1321
        %v1323 = vlaneseq
        %v1324 = vshrl.u32 %v1323, 7
        %v1325 = vsub.s32 %v1322, %v1324
        %v1326 = vrot.slane %v1318, %v1325
        %v1328 = vunpack.c.l.s4 1983009808
        %v1329 = vunpack.c.0.s8 %v1328
        %v1330 = vlaneseq
        %v1331 = vshrl.u32 %v1330, 7
        %v1332 = vsub.s32 %v1329, %v1331
        %v1333 = vrot.slane %v1319, %v1332
        %v1334 = vcombine.low %v1221, %v1313
        %v1335 = vcombine.high %v1221, %v1313
        %v1337 = vunpack.c.l.s4 1983009808
        %v1338 = vunpack.c.0.s8 %v1337
        %v1339 = vlaneseq
        %v1340 = vshrl.u32 %v1339, 7
        %v1341 = vsub.s32 %v1338, %v1340
        %v1342 = vrot.slane %v1334, %v1341
        %v1344 = vunpack.c.l.s4 1983009808
        %v1345 = vunpack.c.0.s8 %v1344
        %v1346 = vlaneseq
        %v1347 = vshrl.u32 %v1346, 7
        %v1348 = vsub.s32 %v1345, %v1347
        %v1349 = vrot.slane %v1335, %v1348
        %v1350 = vcombine.low %v1326, %v1342
        %v1351 = vcombine.high %v1326, %v1342
        %v1353 = vunpack.c.l.s4 1934713408
        %v1354 = vunpack.c.0.s8 %v1353
        %v1355 = vlaneseq
        %v1356 = vshrl.u32 %v1355, 7
        %v1357 = vsub.s32 %v1354, %v1356
        %v1358 = vrot.slane %v1350, %v1357
        %v1360 = vunpack.c.l.s4 1934713408
        %v1361 = vunpack.c.0.s8 %v1360
        %v1362 = vlaneseq
        %v1363 = vshrl.u32 %v1362, 7
        %v1364 = vsub.s32 %v1361, %v1363
        %v1365 = vrot.slane %v1351, %v1364
        %v1366 = vcombine.low %v1333, %v1349
        %v1367 = vcombine.high %v1333, %v1349
        %v1369 = vunpack.c.l.s4 1934713408
        %v1370 = vunpack.c.0.s8 %v1369
        %v1371 = vlaneseq
        %v1372 = vshrl.u32 %v1371, 7
        %v1373 = vsub.s32 %v1370, %v1372
        %v1374 = vrot.slane %v1366, %v1373
        %v1376 = vunpack.c.l.s4 1934713408
        %v1377 = vunpack.c.0.s8 %v1376
        %v1378 = vlaneseq
        %v1379 = vshrl.u32 %v1378, 7
        %v1380 = vsub.s32 %v1377, %v1379
        %v1381 = vrot.slane %v1367, %v1380
        %v1382 = vcombine.high %v1358, 0.0
        %v1383 = vcombine.high %v1365, 0.0
        %v1384 = vcombine.high %v1374, 0.0
        %v1385 = vcombine.high %v1381, 0.0
        %v1386 = vcombine.low %v1358, %v1365
        %v1388 = vunpack.c.l.s4 1983009808
        %v1389 = vunpack.c.0.s8 %v1388
        %v1390 = vlaneseq
        %v1391 = vshrl.u32 %v1390, 7
        %v1392 = vsub.s32 %v1389, %v1391
        %v1393 = vrot.slane %v1386, %v1392
        %v1394 = vcombine.low %v1382, %v1383
        %v1396 = vunpack.c.l.s4 1983009808
        %v1397 = vunpack.c.0.s8 %v1396
        %v1398 = vlaneseq
        %v1399 = vshrl.u32 %v1398, 7
        %v1400 = vsub.s32 %v1397, %v1399
        %v1401 = vrot.slane %v1394, %v1400
        %v1402 = vcombine.low %v1374, %v1381
        %v1404 = vunpack.c.l.s4 1983009808
        %v1405 = vunpack.c.0.s8 %v1404
        %v1406 = vlaneseq
        %v1407 = vshrl.u32 %v1406, 7
        %v1408 = vsub.s32 %v1405, %v1407
        %v1409 = vrot.slane %v1402, %v1408
        %v1410 = vcombine.low %v1384, %v1385
        %v1412 = vunpack.c.l.s4 1983009808
        %v1413 = vunpack.c.0.s8 %v1412
        %v1414 = vlaneseq
        %v1415 = vshrl.u32 %v1414, 7
        %v1416 = vsub.s32 %v1413, %v1415
        %v1417 = vrot.slane %v1410, %v1416
        %v1418 = vcombine.low %v1393, %v1401
        %v1419 = vcombine.high %v1393, %v1401
        %v1421 = vunpack.c.l.s4 1934713408
        %v1422 = vunpack.c.0.s8 %v1421
        %v1423 = vlaneseq
        %v1424 = vshrl.u32 %v1423, 7
        %v1425 = vsub.s32 %v1422, %v1424
        %v1426 = vrot.slane %v1418, %v1425
        %v1428 = vunpack.c.l.s4 1934713408
        %v1429 = vunpack.c.0.s8 %v1428
        %v1430 = vlaneseq
        %v1431 = vshrl.u32 %v1430, 7
        %v1432 = vsub.s32 %v1429, %v1431
        %v1433 = vrot.slane %v1419, %v1432
        %v1434 = vcombine.low %v1409, %v1417
        %v1435 = vcombine.high %v1409, %v1417
        %v1437 = vunpack.c.l.s4 1934713408
        %v1438 = vunpack.c.0.s8 %v1437
        %v1439 = vlaneseq
        %v1440 = vshrl.u32 %v1439, 7
        %v1441 = vsub.s32 %v1438, %v1440
        %v1442 = vrot.slane %v1434, %v1441
        %v1444 = vunpack.c.l.s4 1934713408
        %v1445 = vunpack.c.0.s8 %v1444
        %v1446 = vlaneseq
        %v1447 = vshrl.u32 %v1446, 7
        %v1448 = vsub.s32 %v1445, %v1447
        %v1449 = vrot.slane %v1435, %v1448
        %v1450 = vcombine.low %v1426, %v1442
        %v1451 = vcombine.high %v1426, %v1442
        %v1452 = vcombine.low %v1433, %v1449
        %v1453 = vcombine.high %v1433, %v1449
        %1455 = vrot.lane.b32.xlu0 %v1451, 8
        %v1456 = vpop.permute.xlu0 %1455
        %1459 = vrot.lane.b32.xlu0 %v1452, 16
        %v1460 = vpop.permute.xlu0 %1459
        %1463 = vrot.lane.b32.xlu0 %v1453, 24
        %v1464 = vpop.permute.xlu0 %1463
        %v1466 = vsel %vm889, %v1450, %v1456
        %vm1467 = vcmask 130048
        %v1468 = vsel %vm1467, %v1466, %v1460
        %vm1469 = vcmask 195584
        %v1470 = vsel %vm1469, %v1468, %v1464
        %v1471 = vpack.c.bf16 %v1470, %v1470
        %v1472 = vld [vmem:[#allocation7] sm:$0xf]
        %v1473 = vld [vmem:[#allocation7 + $0x4] sm:$0xf]
        %v1474 = vld [vmem:[#allocation7 + $0x8] sm:$0xf]
        %v1475 = vld [vmem:[#allocation7 + $0xc] sm:$0xf]
        %v1476 = vld [vmem:[#allocation8] sm:$0x1]
        %v1478 = vlaneseq
        %v1479 = vshrl.u32 %v1478, 7
        %v1480 = vsub.s32 0, %v1479
        %v1481 = vrot.slane %v1476, %v1480
        %v1487 = vunpack.c.l.b16 %v1472
        %v1488 = vunpack.c.l.b16 %v1473
        %v1489 = vunpack.c.l.b16 %v1474
        %v1490 = vunpack.c.l.b16 %v1475
        %v1491 = vpack.c.b16 %v1488, %v1487
        %v1492 = vpack.c.b16 %v1490, %v1489
        %v1496 = vsel %vm338, %v1471, 0
        %1498 = vmatprep.subr.bf16.mxu0 0
        %1499 = vmatpush1.bf16.msra.mxu0 %v1491
        %1500 = vmatprep.subr.bf16.mxu0 0
        %1501 = vmatpush1.bf16.msra.mxu0 %v1492
        %1502 = vmatprep.subr.bf16.mxu0 0
        %1503 = vmatpush1.bf16.msra.mxu0 0
        %1504 = vmatprep.subr.bf16.mxu0 0
        %1505 = vmatpush1.bf16.msra.mxu0 0
        %1506 = vmatprep.subr.bf16.mxu0 0
        %1507 = vmatpush1.bf16.msra.mxu0 0
        %1508 = vmatprep.subr.bf16.mxu0 0
        %1509 = vmatpush1.bf16.msra.mxu0 0
        %1510 = vmatprep.subr.bf16.mxu0 0
        %1511 = vmatpush1.bf16.msra.mxu0 0
        %1512 = vmatprep.subr.bf16.mxu0 0
        %1513 = vmatpush1.bf16.msra.mxu0 0
        %1514 = vmatprep.subr.bf16.mxu0 0
        %1515 = vmatpush1.bf16.msra.mxu0 0
        %1516 = vmatprep.subr.bf16.mxu0 0
        %1517 = vmatpush1.bf16.msra.mxu0 0
        %1518 = vmatprep.subr.bf16.mxu0 0
        %1519 = vmatpush1.bf16.msra.mxu0 0
        %1520 = vmatprep.subr.bf16.mxu0 0
        %1521 = vmatpush1.bf16.msra.mxu0 0
        %1522 = vmatprep.subr.bf16.mxu0 0
        %1523 = vmatpush1.bf16.msra.mxu0 0
        %1524 = vmatprep.subr.bf16.mxu0 0
        %1525 = vmatpush1.bf16.msra.mxu0 0
        %1526 = vmatprep.subr.bf16.mxu0 0
        %1527 = vmatpush1.bf16.msra.mxu0 0
        %1528 = vmatprep.subr.bf16.mxu0 0
        %1529 = vmatpush1.bf16.msra.mxu0 0
        %1530 = vmatprep.mubr.bf16.mxu0 0
        %1531 = vmatmul.mubr.bf16.gmra.mrb[0].mxu0 %v1496
        %v1532 = vpop.f32.mrb[0].mxu0
        %v1533 = vadd.f32 %v1481, %v1532
        %v1534 = vpop.f32.mrb[0].mxu0
        %v1535 = vpop.f32.mrb[0].mxu0
        %v1536 = vpop.f32.mrb[0].mxu0
        %1537 = vdwg.mxu0
        %v1538 = vadd.f32 %v335, %v1533
        %1539 = vst.msk [vmem:[%s333] sm:$0xff] %vm338, %v1538
        %s1540 = sand.u32 %s165, 1
        %s1541 = scalar_lea.sflag [#allocation4], %s1540
        %s1542 = sand.u32 %s165, 1
        %s1543 = smul.addr %s1542, 8
        %s1544 = scalar_lea.vmem [#allocation13], %s1543
        // Predicated region
        $region69: #{tpu_custom_call.1} parent=43 // pred_check
          %p1545 = pneg %p175
        $region70: #{tpu_custom_call.1} parent=43 // pred_check_branch
          %1547 = sbr.rel (%p1545) target = $region72
        $region71: #{tpu_custom_call.1} parent=43 // pred_region
          %s1549 = ssub.s32 128, 128
          %1550 = vsyncadd %s1541, %s1549
          %s1551 = smul.addr %s26, 128
          %s1552 = scalar_lea.hbm %s6, %s1551
          %s1554 = sshll.u32 %s1544, 4
          %s1555 = int_to_ptr.vmem [resolvable:$true] %s1554
          %1557 = dma.vmem_to_hbm [thread:$0]  %s1555, 128, %s1552, %s1541
        $region72: #{tpu_custom_call.1} parent=43 // pred_fallthru
          _
      $region44: #{tpu_custom_call.1} parent=5 // pred_fallthru
        _
      %p1558 = scmp.le.s32.totalorder 2, %s21
      // Predicated region
      $region73: #{tpu_custom_call.1} parent=5 // pred_check
        %p1559 = pneg %p1558
      $region74: #{tpu_custom_call.1} parent=5 // pred_check_branch
        %1561 = sbr.rel (%p1559) target = $region76
      $region75: #{tpu_custom_call.1} parent=5 // pred_region
        %s1562 = ssub.s32 %s21, 2
        // Predicated region
        $region77: #{tpu_custom_call.1} parent=75 // pred_check
          %p1563 = pneg %p181
        $region78: #{tpu_custom_call.1} parent=75 // pred_check_branch
          %1565 = sbr.rel (%p1563) target = $region80
        $region79: #{tpu_custom_call.1} parent=75 // pred_region
          %s1566 = sand.u32 %s166, 1
          %s1567 = scalar_lea.sflag [#allocation4], %s1566
          %s1568 = sand.u32 %s166, 1
          %s1569 = smul.addr %s1568, 8
          %s1570 = scalar_lea.vmem [#allocation13], %s1569
          %1571 = dma.done %s1567, 128
        $region80: #{tpu_custom_call.1} parent=75 // pred_fallthru
          _
      $region76: #{tpu_custom_call.1} parent=5 // pred_fallthru
        _
    $region6: #{tpu_custom_call.1} parent=1 // loop_footer
      %s25 = sadd.s32 1, %s21
    $region7: #{tpu_custom_call.1} parent=1 // loop_footer_branch
      %20 = sbr.rel target = $region3
    $region8: #{tpu_custom_call.1} parent=1 // loop_exit
      _
    %1572 = vsyncpa [#allocation3], 1
    %s1573 = scalar_lea.sflag [#allocation3], 1
    %1574 = vsyncpa %s1573, 1
    %1575 = vsyncpa [#allocation6], 1
    %1576 = vsyncpa [#allocation9], 1
    %1577 = vsyncpa [#allocation12], 1
    %1578 = vsyncpa [#allocation4], 1
    %s1579 = scalar_lea.sflag [#allocation4], 1
    %1580 = vsyncpa %s1579, 1

</llo_original>
